<compile_context>
chip_gen: v7x
topology: tpu7x:2x2x1
jax: 0.10.0
libtpu: 0.0.40
codegen_flags: <defaults>
</compile_context>

<pallas_src>
import numpy as np

import jax
import jax.numpy as jnp
from jax.experimental import pallas as pl
from jax.experimental.pallas import tpu as pltpu


def _round_up(x, m):
    return ((x + m - 1) // m) * m


def _nbytes(a):
    return int(a.size) * int(jnp.dtype(a.dtype).itemsize)


# --------------------------------------------------------------------------
# Kernel 1: fused residual trunk (stem + all residual blocks)
# --------------------------------------------------------------------------
def _trunk_kernel(x_ref, smat_ref, w_ref, bn_scale_ref, bn_shift_ref,
                  o_ref, act_ref, res_ref):
    """One grid step == one conv layer.  act/res scratch stay resident."""
    l = pl.program_id(0)
    n_layers = pl.num_programs(0)

    @pl.when(l == 0)
    def _load_input():
        act_ref[...] = x_ref[...]
        res_ref[...] = x_ref[...]            # init so later reads are never garbage

    # layers 1, 3, 5, ... open a residual block: snapshot its input
    @pl.when((l % 2) == 1)
    def _save_residual():
        res_ref[...] = act_ref[...]

    act_bf = act_ref[...].astype(jnp.bfloat16)     # bf16 MXU operands
    m, c = act_ref.shape
    acc = jnp.zeros((m, c), jnp.float32)

    # 3x3 conv (stride 1, pad 1) as 9 accumulated matmuls over shifted+masked
    # copies of the VMEM-resident activation.  smat_ref[t] is a static 0/1
    # row-shift+boundary-mask operator; w_ref[t] is the (Cin, Cout) tap weight.
    for t in range(9):
        tap = jnp.dot(smat_ref[t], act_bf,
                      preferred_element_type=jnp.float32).astype(jnp.bfloat16)
        acc = acc + jnp.dot(tap, w_ref[t], preferred_element_type=jnp.float32)

    # folded conv-bias + BatchNorm (eval mode) affine -- f32 epilogue
    acc = acc * bn_scale_ref[...] + bn_shift_ref[...]

    # layers 2, 4, 6, ... close a residual block: add the saved residual
    is_block_end = jnp.logical_and(l >= 2, (l % 2) == 0)
    acc = acc + is_block_end.astype(jnp.float32) * res_ref[...]

    act_ref[...] = jnp.maximum(acc, 0.0)           # ReLU

    @pl.when(l == n_layers - 1)
    def _write_output():
        o_ref[...] = act_ref[...]


def _trunk_pallas(x2d, shift_mats, w_stack, scale_stack, shift_stack):
    M, C = x2d.shape
    L = w_stack.shape[0]
    flops = L * 9 * 2 * M * C * (M + C)
    bytes_accessed = int(sum(_nbytes(a) for a in
                             (x2d, shift_mats, w_stack, scale_stack, shift_stack))
                         + M * C * 4)
    return pl.pallas_call(
        _trunk_kernel,
        out_shape=jax.ShapeDtypeStruct((M, C), jnp.float32),
        grid=(L,),
        in_specs=[
            pl.BlockSpec((M, C), lambda l: (0, 0)),              # input (step 0 only)
            pl.BlockSpec((9, M, M), lambda l: (0, 0, 0)),        # shift/mask operators
            pl.BlockSpec((None, 9, C, C), lambda l: (l, 0, 0, 0)),  # per-layer taps
            pl.BlockSpec((None, 1, C), lambda l: (l, 0, 0)),     # folded BN scale
            pl.BlockSpec((None, 1, C), lambda l: (l, 0, 0)),     # folded BN shift + bias
        ],
        out_specs=pl.BlockSpec((M, C), lambda l: (0, 0)),
        scratch_shapes=[pltpu.VMEM((M, C), jnp.float32),         # resident activation
                        pltpu.VMEM((M, C), jnp.float32)],        # resident residual
        compiler_params=pltpu.CompilerParams(
            dimension_semantics=("arbitrary",),
            vmem_limit_bytes=32 * 1024 * 1024),
        cost_estimate=pl.CostEstimate(flops=int(flops), transcendentals=0,
                                      bytes_accessed=bytes_accessed),
    )(x2d, shift_mats, w_stack, scale_stack, shift_stack)


# --------------------------------------------------------------------------
# Kernel 2: fused policy + value heads (lane-dense padded outputs)
# --------------------------------------------------------------------------
def _heads_kernel(h_ref, bsum_ref,
                  wpc_ref, pc_scale_ref, pc_shift_ref, wpl_ref, pbias_ref,
                  wvc_ref, vc_scale_ref, vc_shift_ref, wvl1_ref, vb1_ref,
                  wvl2_ref, vb2_ref,
                  pol_ref, val_ref):
    h_bf = h_ref[...].astype(jnp.bfloat16)                 # (M, C)
    bsum = bsum_ref[...]                                   # (B, M) per-batch row-sum

    # ---- policy: 1x1 conv + BN + ReLU; NCHW flatten folded into weight order;
    #      linear; log_softmax.  Output padded to A_pad lanes (pad bias=-1e30).
    u = jnp.dot(h_bf, wpc_ref[...], preferred_element_type=jnp.float32)   # (M, 2)
    u = jnp.maximum(u * pc_scale_ref[...] + pc_shift_ref[...], 0.0)
    wp0 = wpl_ref[0].astype(jnp.float32)                                  # (M, A_pad)
    wp1 = wpl_ref[1].astype(jnp.float32)
    contrib = u[:, 0:1] * wp0 + u[:, 1:2] * wp1                           # (M, A_pad)
    logits = jnp.dot(bsum, contrib.astype(jnp.bfloat16),
                     preferred_element_type=jnp.float32) + pbias_ref[...]  # (B, A_pad)
    mx = jnp.max(logits, axis=-1, keepdims=True)
    lse = jnp.log(jnp.sum(jnp.exp(logits - mx), axis=-1, keepdims=True)) + mx
    pol_ref[...] = logits - lse

    # ---- value: 1x1 conv + BN + ReLU; linear; ReLU; linear; tanh.
    v = jnp.dot(h_bf, wvc_ref[...], preferred_element_type=jnp.float32)   # (M, 1)
    v = jnp.maximum(v * vc_scale_ref[...] + vc_shift_ref[...], 0.0)
    vcontrib = v * wvl1_ref[...].astype(jnp.float32)                      # (M, C)
    v1 = jnp.dot(bsum, vcontrib.astype(jnp.bfloat16),
                 preferred_element_type=jnp.float32) + vb1_ref[...]       # (B, C)
    v1 = jnp.maximum(v1, 0.0)
    v2 = jnp.dot(v1.astype(jnp.bfloat16), wvl2_ref[...],
                 preferred_element_type=jnp.float32) + vb2_ref[...]       # (B, V_pad)
    val_ref[...] = jnp.tanh(v2)


def _heads_pallas(h2d, bsum, heads, wpl_big, wvl1_big):
    M, C = h2d.shape
    B = bsum.shape[0]
    A_pad = wpl_big.shape[-1]
    V_pad = heads["wvl2"].shape[-1]

    def _fb(shape):
        n = len(shape)
        return pl.BlockSpec(shape, lambda *_: (0,) * n)

    args = (h2d, bsum,
            heads["wpc"], heads["pc_scale"], heads["pc_shift"], wpl_big, heads["pbias"],
            heads["wvc"], heads["vc_scale"], heads["vc_shift"], wvl1_big, heads["vb1"],
            heads["wvl2"], heads["vb2"])
    in_specs = [_fb(a.shape) for a in args]
    flops = int(2 * M * C * 3 + 6 * M * A_pad + 2 * M * C
                + 2 * B * M * (A_pad + C) + 2 * B * C * V_pad)
    bytes_accessed = int(sum(_nbytes(a) for a in args) + B * (A_pad + V_pad) * 4)
    return pl.pallas_call(
        _heads_kernel,
        out_shape=(jax.ShapeDtypeStruct((B, A_pad), jnp.float32),
                   jax.ShapeDtypeStruct((B, V_pad), jnp.float32)),
        grid=(1,),
        in_specs=in_specs,
        out_specs=(_fb((B, A_pad)), _fb((B, V_pad))),
        compiler_params=pltpu.CompilerParams(
            dimension_semantics=("arbitrary",),
            vmem_limit_bytes=32 * 1024 * 1024),
        cost_estimate=pl.CostEstimate(flops=flops,
                                      transcendentals=int(2 * B * (A_pad + V_pad)),
                                      bytes_accessed=bytes_accessed),
    )(*args)


# --------------------------------------------------------------------------
# Static (compile-time) structural operators
# --------------------------------------------------------------------------
def _shift_and_mask_mats(B, H, W):
    """(9, M, M) 0/1 operators: S[t] @ act == activation shifted by conv tap t,
    with out-of-bounds (padding) rows zeroed."""
    M = B * H * W
    r = np.arange(M)
    b, y, x = r // (H * W), (r // W) % H, r % W
    mats = np.zeros((9, M, M), np.float32)
    for t in range(9):
        dy, dx = t // 3 - 1, t % 3 - 1
        yy, xx = y + dy, x + dx
        valid = (yy >= 0) & (yy < H) & (xx >= 0) & (xx < W)
        src = b * H * W + yy * W + xx
        mats[t, r[valid], src[valid]] = 1.0
    return mats


# --------------------------------------------------------------------------
# Deterministic parameter initialization (already in kernel layout)
# --------------------------------------------------------------------------
def init_network(key, in_channels, out_channels, num_res, board_size, action_size):
    C = out_channels
    HW = board_size
    A_pad = _round_up(action_size, 128)
    V_pad = 128
    L = 1 + 2 * num_res
    keys = jax.random.split(key, 6 + 2 * num_res)

    def conv_bn(k, cin, cout, ksize):
        kw, kb, kg, kbe, km, kv = jax.random.split(k, 6)
        w = 0.1 * jax.random.normal(kw, (cout, cin, ksize, ksize), jnp.float32)
        b = 0.1 * jax.random.normal(kb, (cout,), jnp.float32)
        gamma = 1.0 + 0.1 * jax.random.normal(kg, (cout,), jnp.float32)
        beta = 0.1 * jax.random.normal(kbe, (cout,), jnp.float32)
        mean = 0.1 * jax.random.normal(km, (cout,), jnp.float32)
        var = 1.0 + 0.1 * jnp.abs(jax.random.normal(kv, (cout,), jnp.float32))
        scale = gamma / jnp.sqrt(var + 1e-5)
        shift = beta - mean * scale + b * scale      # conv bias folded into BN shift
        return w, scale, shift

    def linear(k, fin, fout):
        kw, kb = jax.random.split(k)
        w = 0.1 * jax.random.normal(kw, (fout, fin), jnp.float32)
        b = 0.1 * jax.random.normal(kb, (fout,), jnp.float32)
        return w, b

    # ---- trunk: stem + 2*num_res convs, stacked for the layer grid ----------
    def conv_taps(w, cin):
        # (cout, cin, 3, 3) -> (9, C, cout); tap t = dy*3+dx; rows beyond cin zero
        taps = jnp.transpose(w, (2, 3, 1, 0)).reshape(9, cin, C)
        if cin < C:
            taps = jnp.pad(taps, ((0, 0), (0, C - cin), (0, 0)))
        return taps

    w_list, sc_list, sh_list = [], [], []
    w0, s0, h0 = conv_bn(keys[0], in_channels, C, 3)
    w_list.append(conv_taps(w0, in_channels)); sc_list.append(s0); sh_list.append(h0)
    for i in range(num_res):
        for j in range(2):
            w_, s_, h_ = conv_bn(keys[1 + 2 * i + j], C, C, 3)
            w_list.append(conv_taps(w_, C)); sc_list.append(s_); sh_list.append(h_)
    trunk = {
        "w": jnp.stack(w_list).astype(jnp.bfloat16),                    # (L, 9, C, C)
        "scale": jnp.stack(sc_list).reshape(L, 1, C).astype(jnp.float32),
        "shift": jnp.stack(sh_list).reshape(L, 1, C).astype(jnp.float32),
    }

    # ---- heads --------------------------------------------------------------
    wpc, pcs, pch = conv_bn(keys[1 + 2 * num_res], C, 2, 1)
    wpl, pbl = linear(keys[2 + 2 * num_res], 2 * HW, action_size)
    wvc, vcs, vch = conv_bn(keys[3 + 2 * num_res], C, 1, 1)
    wv1, bv1 = linear(keys[4 + 2 * num_res], HW, C)
    wv2, bv2 = linear(keys[5 + 2 * num_res], C, 1)

    # fold PyTorch's NCHW flatten into the policy-linear weight ordering,
    # pad the action axis to a lane-dense multiple of 128 (pad bias = -1e30 so
    # the in-kernel log_softmax ignores padded lanes).
    wpl_r = wpl.T.reshape(2, HW, action_size)                           # [c, s, a]
    wpl_r = jnp.pad(wpl_r, ((0, 0), (0, 0), (0, A_pad - action_size)))
    pbias = jnp.full((1, A_pad), -1e30, jnp.float32).at[0, :action_size].set(pbl)

    wv2_p = jnp.zeros((C, V_pad), jnp.float32).at[:, 0].set(wv2[0])
    vb2_p = jnp.zeros((1, V_pad), jnp.float32).at[0, 0].set(bv2[0])

    heads = {
        "wpc": wpc.reshape(2, C).T.astype(jnp.bfloat16),                # (C, 2)
        "pc_scale": pcs.reshape(1, 2).astype(jnp.float32),
        "pc_shift": pch.reshape(1, 2).astype(jnp.float32),
        "wpl": wpl_r.astype(jnp.bfloat16),                              # (2, HW, A_pad)
        "pbias": pbias,
        "wvc": wvc.reshape(1, C).T.astype(jnp.bfloat16),                # (C, 1)
        "vc_scale": vcs.reshape(1, 1).astype(jnp.float32),
        "vc_shift": vch.reshape(1, 1).astype(jnp.float32),
        "wvl1": wv1.T.astype(jnp.bfloat16),                             # (HW, C)
        "vb1": bv1.reshape(1, C).astype(jnp.float32),
        "wvl2": wv2_p.astype(jnp.bfloat16),                             # (C, 128)
        "vb2": vb2_p,
    }
    return {"trunk": trunk, "heads": heads}


# --------------------------------------------------------------------------
# Forward pass
# --------------------------------------------------------------------------
def network_forward(params, x_nchw, action_size):
    trunk, heads = params["trunk"], params["heads"]
    B, Cin, H, Wsp = x_nchw.shape
    C = trunk["w"].shape[-1]
    HW = heads["wvl1"].shape[0]
    assert H * Wsp == HW and Cin <= C
    M = B * HW

    # NCHW -> NHWC-flat rows (b, y, x); channels on lanes, zero-padded to C so
    # the stem shares the stacked-layer (9, C, C) weight layout.
    x2d = jnp.transpose(x_nchw, (0, 2, 3, 1)).reshape(M, Cin).astype(jnp.float32)
    x2d = jnp.pad(x2d, ((0, 0), (0, C - Cin)))

    # compile-time constants (numpy): conv-tap shift/mask operators and the
    # per-batch row-sum operator used by the head reductions.
    shift_mats = jnp.asarray(_shift_and_mask_mats(B, H, Wsp), jnp.bfloat16)
    bsum = jnp.asarray(np.repeat(np.eye(B, dtype=np.float32), HW, axis=1),
                       jnp.bfloat16)

    # --- kernel 1: whole residual trunk, activation resident in VMEM ---------
    h2d = _trunk_pallas(x2d, shift_mats, trunk["w"], trunk["scale"], trunk["shift"])

    # --- kernel 2: fused policy + value heads ---------------------------------
    wpl_big = jnp.tile(heads["wpl"], (1, B, 1))      # (2, M, A_pad)
    wvl1_big = jnp.tile(heads["wvl1"], (B, 1))       # (M, C)
    pol_pad, val_pad = _heads_pallas(h2d, bsum, heads, wpl_big, wvl1_big)

    return pol_pad[:, :action_size], val_pad[:, :1]


# --------------------------------------------------------------------------
if __name__ == "__main__":
    # Small config consistent with the module:
    #   in_channels=4, out_channels=32, num_of_res_layers=2,
    #   board 4x4 -> board_size=16, action_size=17 (board + pass)
    B, IN_C, OUT_C, N_RES = 2, 4, 32, 2
    H = W = 4
    BOARD_SIZE = H * W
    ACTION_SIZE = BOARD_SIZE + 1

    key = jax.random.PRNGKey(0)
    k_param, k_x = jax.random.split(key)
    params = init_network(k_param, IN_C, OUT_C, N_RES, BOARD_SIZE, ACTION_SIZE)
    x = jax.random.normal(k_x, (B, IN_C, H, W), jnp.float32)   # NCHW like PyTorch

    fwd = jax.jit(network_forward, static_argnames=("action_size",))
    log_policy, value = fwd(params, x, action_size=ACTION_SIZE)
    jax.block_until_ready((log_policy, value))

    assert log_policy.shape == (B, ACTION_SIZE)
    assert value.shape == (B, 1)
    # log_softmax rows must (log-)sum to 1
    assert jnp.allclose(jnp.sum(jnp.exp(log_policy), axis=1), 1.0, atol=1e-4)
    assert bool(jnp.all(jnp.abs(value) <= 1.0))
    print("KERNEL_OK")
</pallas_src>

<mosaic_0001>
module attributes {stable_mosaic.version = 11 : i64} {
  func.func @_trunk_kernel(%arg0: i32, %arg1: memref<32x32xf32, #tpu.memory_space<vmem>>, %arg2: memref<9x32x32xbf16, #tpu.memory_space<vmem>>, %arg3: memref<1x9x32x32xbf16, #tpu.memory_space<vmem>>, %arg4: memref<1x1x32xf32, #tpu.memory_space<vmem>>, %arg5: memref<1x1x32xf32, #tpu.memory_space<vmem>>, %arg6: memref<32x32xf32, #tpu.memory_space<vmem>>, %arg7: memref<32x32xf32, #tpu.memory_space<vmem>>, %arg8: memref<32x32xf32, #tpu.memory_space<vmem>>) attributes {dimension_semantics = [#tpu.dimension_semantics<arbitrary>], iteration_bounds = array<i64: 5>, scalar_prefetch = 0 : i64, scratch_operands = 2 : i64, tpu.core_type = #tpu.core_type<tc>, window_params = [{pipeline_mode = #tpu.pipeline_mode<synchronous>, transform_indices = @transform_0, window_bounds = array<i64: 32, 32>}, {pipeline_mode = #tpu.pipeline_mode<synchronous>, transform_indices = @transform_1, window_bounds = array<i64: 9, 32, 32>}, {transform_indices = @transform_2, window_bounds = array<i64: 1, 9, 32, 32>}, {transform_indices = @transform_3, window_bounds = array<i64: 1, 1, 32>}, {transform_indices = @transform_4, window_bounds = array<i64: 1, 1, 32>}, {pipeline_mode = #tpu.pipeline_mode<synchronous>, transform_indices = @transform_5, window_bounds = array<i64: 32, 32>}]} {
    %c0_i32 = arith.constant 0 : i32
    %0 = arith.cmpi eq, %arg0, %c0_i32 : i32
    %1 = arith.extui %0 : i1 to i32
    %c0_i32_0 = arith.constant 0 : i32
    %2 = arith.cmpi ne, %1, %c0_i32_0 : i32
    scf.if %2 {
      %c0_101 = arith.constant 0 : index
      %c0_102 = arith.constant 0 : index
      %124 = vector.load %arg1[%c0_101, %c0_102] : memref<32x32xf32, #tpu.memory_space<vmem>>, vector<32x32xf32>
      %c0_103 = arith.constant 0 : index
      %c0_104 = arith.constant 0 : index
      %125 = vector.load %arg7[%c0_103, %c0_104] : memref<32x32xf32, #tpu.memory_space<vmem>>, vector<32x32xf32>
      tpu.vector_store %arg7[%c0_103, %c0_104], %124 {strides = array<i32>} : memref<32x32xf32, #tpu.memory_space<vmem>>, vector<32x32xf32>,
      %c0_105 = arith.constant 0 : index
      %c0_106 = arith.constant 0 : index
      %126 = vector.load %arg1[%c0_105, %c0_106] : memref<32x32xf32, #tpu.memory_space<vmem>>, vector<32x32xf32>
      %c0_107 = arith.constant 0 : index
      %c0_108 = arith.constant 0 : index
      %127 = vector.load %arg8[%c0_107, %c0_108] : memref<32x32xf32, #tpu.memory_space<vmem>>, vector<32x32xf32>
      tpu.vector_store %arg8[%c0_107, %c0_108], %126 {strides = array<i32>} : memref<32x32xf32, #tpu.memory_space<vmem>>, vector<32x32xf32>,
    } else {
    }
    %c2_i32 = arith.constant 2 : i32
    %c0_i32_1 = arith.constant 0 : i32
    %3 = arith.cmpi eq, %c2_i32, %c0_i32_1 : i32
    %c1_i32 = arith.constant 1 : i32
    %4 = arith.select %3, %c1_i32, %c2_i32 : i32
    %5 = arith.remsi %arg0, %4 : i32
    %c0_i32_2 = arith.constant 0 : i32
    %6 = arith.cmpi ne, %5, %c0_i32_2 : i32
    %c0_i32_3 = arith.constant 0 : i32
    %7 = arith.cmpi slt, %5, %c0_i32_3 : i32
    %c0_i32_4 = arith.constant 0 : i32
    %8 = arith.cmpi slt, %4, %c0_i32_4 : i32
    %9 = arith.xori %7, %8 : i1
    %10 = arith.andi %9, %6 : i1
    %11 = arith.addi %5, %4 : i32
    %12 = arith.select %10, %11, %5 : i32
    %c1_i32_5 = arith.constant 1 : i32
    %13 = arith.cmpi eq, %12, %c1_i32_5 : i32
    %14 = arith.extui %13 : i1 to i32
    %c0_i32_6 = arith.constant 0 : i32
    %15 = arith.cmpi ne, %14, %c0_i32_6 : i32
    scf.if %15 {
      %c0_101 = arith.constant 0 : index
      %c0_102 = arith.constant 0 : index
      %124 = vector.load %arg7[%c0_101, %c0_102] : memref<32x32xf32, #tpu.memory_space<vmem>>, vector<32x32xf32>
      %c0_103 = arith.constant 0 : index
      %c0_104 = arith.constant 0 : index
      %125 = vector.load %arg8[%c0_103, %c0_104] : memref<32x32xf32, #tpu.memory_space<vmem>>, vector<32x32xf32>
      tpu.vector_store %arg8[%c0_103, %c0_104], %124 {strides = array<i32>} : memref<32x32xf32, #tpu.memory_space<vmem>>, vector<32x32xf32>,
    } else {
    }
    %c0 = arith.constant 0 : index
    %c0_7 = arith.constant 0 : index
    %16 = vector.load %arg7[%c0, %c0_7] : memref<32x32xf32, #tpu.memory_space<vmem>>, vector<32x32xf32>
    %17 = arith.truncf %16 : vector<32x32xf32> to vector<32x32xbf16>
    %cst = arith.constant 0.000000e+00 : f32
    %18 = vector.broadcast %cst : f32 to vector<32x32xf32>
    %c0_8 = arith.constant 0 : index
    %c0_9 = arith.constant 0 : index
    %c0_10 = arith.constant 0 : index
    %19 = vector.load %arg2[%c0_8, %c0_9, %c0_10] : memref<9x32x32xbf16, #tpu.memory_space<vmem>>, vector<1x32x32xbf16>
    %20 = vector.shape_cast %19 : vector<1x32x32xbf16> to vector<32x32xbf16>
    %cst_11 = arith.constant dense<0.000000e+00> : vector<32x32xf32>
    %21 = tpu.matmul %20, %17, %cst_11 {dimension_numbers = #tpu.dot_dimension_numbers<[1], [0], [0], [1], [0, 0, 1, 1], [], []>} : vector<32x32xbf16>, vector<32x32xbf16>, vector<32x32xf32> -> vector<32x32xf32>
    %22 = arith.truncf %21 : vector<32x32xf32> to vector<32x32xbf16>
    %c0_12 = arith.constant 0 : index
    %c0_13 = arith.constant 0 : index
    %c0_14 = arith.constant 0 : index
    %c0_15 = arith.constant 0 : index
    %23 = vector.load %arg3[%c0_12, %c0_13, %c0_14, %c0_15] : memref<1x9x32x32xbf16, #tpu.memory_space<vmem>>, vector<1x1x32x32xbf16>
    %24 = vector.shape_cast %23 : vector<1x1x32x32xbf16> to vector<32x32xbf16>
    %cst_16 = arith.constant dense<0.000000e+00> : vector<32x32xf32>
    %25 = tpu.matmul %22, %24, %cst_16 {dimension_numbers = #tpu.dot_dimension_numbers<[1], [0], [0], [1], [0, 0, 1, 1], [], []>} : vector<32x32xbf16>, vector<32x32xbf16>, vector<32x32xf32> -> vector<32x32xf32>
    %26 = arith.addf %18, %25 : vector<32x32xf32>
    %c1 = arith.constant 1 : index
    %c0_17 = arith.constant 0 : index
    %c0_18 = arith.constant 0 : index
    %27 = vector.load %arg2[%c1, %c0_17, %c0_18] : memref<9x32x32xbf16, #tpu.memory_space<vmem>>, vector<1x32x32xbf16>
    %28 = vector.shape_cast %27 : vector<1x32x32xbf16> to vector<32x32xbf16>
    %cst_19 = arith.constant dense<0.000000e+00> : vector<32x32xf32>
    %29 = tpu.matmul %28, %17, %cst_19 {dimension_numbers = #tpu.dot_dimension_numbers<[1], [0], [0], [1], [0, 0, 1, 1], [], []>} : vector<32x32xbf16>, vector<32x32xbf16>, vector<32x32xf32> -> vector<32x32xf32>
    %30 = arith.truncf %29 : vector<32x32xf32> to vector<32x32xbf16>
    %c0_20 = arith.constant 0 : index
    %c1_21 = arith.constant 1 : index
    %c0_22 = arith.constant 0 : index
    %c0_23 = arith.constant 0 : index
    %31 = vector.load %arg3[%c0_20, %c1_21, %c0_22, %c0_23] : memref<1x9x32x32xbf16, #tpu.memory_space<vmem>>, vector<1x1x32x32xbf16>
    %32 = vector.shape_cast %31 : vector<1x1x32x32xbf16> to vector<32x32xbf16>
    %cst_24 = arith.constant dense<0.000000e+00> : vector<32x32xf32>
    %33 = tpu.matmul %30, %32, %cst_24 {dimension_numbers = #tpu.dot_dimension_numbers<[1], [0], [0], [1], [0, 0, 1, 1], [], []>} : vector<32x32xbf16>, vector<32x32xbf16>, vector<32x32xf32> -> vector<32x32xf32>
    %34 = arith.addf %26, %33 : vector<32x32xf32>
    %c2 = arith.constant 2 : index
    %c0_25 = arith.constant 0 : index
    %c0_26 = arith.constant 0 : index
    %35 = vector.load %arg2[%c2, %c0_25, %c0_26] : memref<9x32x32xbf16, #tpu.memory_space<vmem>>, vector<1x32x32xbf16>
    %36 = vector.shape_cast %35 : vector<1x32x32xbf16> to vector<32x32xbf16>
    %cst_27 = arith.constant dense<0.000000e+00> : vector<32x32xf32>
    %37 = tpu.matmul %36, %17, %cst_27 {dimension_numbers = #tpu.dot_dimension_numbers<[1], [0], [0], [1], [0, 0, 1, 1], [], []>} : vector<32x32xbf16>, vector<32x32xbf16>, vector<32x32xf32> -> vector<32x32xf32>
    %38 = arith.truncf %37 : vector<32x32xf32> to vector<32x32xbf16>
    %c0_28 = arith.constant 0 : index
    %c2_29 = arith.constant 2 : index
    %c0_30 = arith.constant 0 : index
    %c0_31 = arith.constant 0 : index
    %39 = vector.load %arg3[%c0_28, %c2_29, %c0_30, %c0_31] : memref<1x9x32x32xbf16, #tpu.memory_space<vmem>>, vector<1x1x32x32xbf16>
    %40 = vector.shape_cast %39 : vector<1x1x32x32xbf16> to vector<32x32xbf16>
    %cst_32 = arith.constant dense<0.000000e+00> : vector<32x32xf32>
    %41 = tpu.matmul %38, %40, %cst_32 {dimension_numbers = #tpu.dot_dimension_numbers<[1], [0], [0], [1], [0, 0, 1, 1], [], []>} : vector<32x32xbf16>, vector<32x32xbf16>, vector<32x32xf32> -> vector<32x32xf32>
    %42 = arith.addf %34, %41 : vector<32x32xf32>
    %c3 = arith.constant 3 : index
    %c0_33 = arith.constant 0 : index
    %c0_34 = arith.constant 0 : index
    %43 = vector.load %arg2[%c3, %c0_33, %c0_34] : memref<9x32x32xbf16, #tpu.memory_space<vmem>>, vector<1x32x32xbf16>
    %44 = vector.shape_cast %43 : vector<1x32x32xbf16> to vector<32x32xbf16>
    %cst_35 = arith.constant dense<0.000000e+00> : vector<32x32xf32>
    %45 = tpu.matmul %44, %17, %cst_35 {dimension_numbers = #tpu.dot_dimension_numbers<[1], [0], [0], [1], [0, 0, 1, 1], [], []>} : vector<32x32xbf16>, vector<32x32xbf16>, vector<32x32xf32> -> vector<32x32xf32>
    %46 = arith.truncf %45 : vector<32x32xf32> to vector<32x32xbf16>
    %c0_36 = arith.constant 0 : index
    %c3_37 = arith.constant 3 : index
    %c0_38 = arith.constant 0 : index
    %c0_39 = arith.constant 0 : index
    %47 = vector.load %arg3[%c0_36, %c3_37, %c0_38, %c0_39] : memref<1x9x32x32xbf16, #tpu.memory_space<vmem>>, vector<1x1x32x32xbf16>
    %48 = vector.shape_cast %47 : vector<1x1x32x32xbf16> to vector<32x32xbf16>
    %cst_40 = arith.constant dense<0.000000e+00> : vector<32x32xf32>
    %49 = tpu.matmul %46, %48, %cst_40 {dimension_numbers = #tpu.dot_dimension_numbers<[1], [0], [0], [1], [0, 0, 1, 1], [], []>} : vector<32x32xbf16>, vector<32x32xbf16>, vector<32x32xf32> -> vector<32x32xf32>
    %50 = arith.addf %42, %49 : vector<32x32xf32>
    %c4 = arith.constant 4 : index
    %c0_41 = arith.constant 0 : index
    %c0_42 = arith.constant 0 : index
    %51 = vector.load %arg2[%c4, %c0_41, %c0_42] : memref<9x32x32xbf16, #tpu.memory_space<vmem>>, vector<1x32x32xbf16>
    %52 = vector.shape_cast %51 : vector<1x32x32xbf16> to vector<32x32xbf16>
    %cst_43 = arith.constant dense<0.000000e+00> : vector<32x32xf32>
    %53 = tpu.matmul %52, %17, %cst_43 {dimension_numbers = #tpu.dot_dimension_numbers<[1], [0], [0], [1], [0, 0, 1, 1], [], []>} : vector<32x32xbf16>, vector<32x32xbf16>, vector<32x32xf32> -> vector<32x32xf32>
    %54 = arith.truncf %53 : vector<32x32xf32> to vector<32x32xbf16>
    %c0_44 = arith.constant 0 : index
    %c4_45 = arith.constant 4 : index
    %c0_46 = arith.constant 0 : index
    %c0_47 = arith.constant 0 : index
    %55 = vector.load %arg3[%c0_44, %c4_45, %c0_46, %c0_47] : memref<1x9x32x32xbf16, #tpu.memory_space<vmem>>, vector<1x1x32x32xbf16>
    %56 = vector.shape_cast %55 : vector<1x1x32x32xbf16> to vector<32x32xbf16>
    %cst_48 = arith.constant dense<0.000000e+00> : vector<32x32xf32>
    %57 = tpu.matmul %54, %56, %cst_48 {dimension_numbers = #tpu.dot_dimension_numbers<[1], [0], [0], [1], [0, 0, 1, 1], [], []>} : vector<32x32xbf16>, vector<32x32xbf16>, vector<32x32xf32> -> vector<32x32xf32>
    %58 = arith.addf %50, %57 : vector<32x32xf32>
    %c5 = arith.constant 5 : index
    %c0_49 = arith.constant 0 : index
    %c0_50 = arith.constant 0 : index
    %59 = vector.load %arg2[%c5, %c0_49, %c0_50] : memref<9x32x32xbf16, #tpu.memory_space<vmem>>, vector<1x32x32xbf16>
    %60 = vector.shape_cast %59 : vector<1x32x32xbf16> to vector<32x32xbf16>
    %cst_51 = arith.constant dense<0.000000e+00> : vector<32x32xf32>
    %61 = tpu.matmul %60, %17, %cst_51 {dimension_numbers = #tpu.dot_dimension_numbers<[1], [0], [0], [1], [0, 0, 1, 1], [], []>} : vector<32x32xbf16>, vector<32x32xbf16>, vector<32x32xf32> -> vector<32x32xf32>
    %62 = arith.truncf %61 : vector<32x32xf32> to vector<32x32xbf16>
    %c0_52 = arith.constant 0 : index
    %c5_53 = arith.constant 5 : index
    %c0_54 = arith.constant 0 : index
    %c0_55 = arith.constant 0 : index
    %63 = vector.load %arg3[%c0_52, %c5_53, %c0_54, %c0_55] : memref<1x9x32x32xbf16, #tpu.memory_space<vmem>>, vector<1x1x32x32xbf16>
    %64 = vector.shape_cast %63 : vector<1x1x32x32xbf16> to vector<32x32xbf16>
    %cst_56 = arith.constant dense<0.000000e+00> : vector<32x32xf32>
    %65 = tpu.matmul %62, %64, %cst_56 {dimension_numbers = #tpu.dot_dimension_numbers<[1], [0], [0], [1], [0, 0, 1, 1], [], []>} : vector<32x32xbf16>, vector<32x32xbf16>, vector<32x32xf32> -> vector<32x32xf32>
    %66 = arith.addf %58, %65 : vector<32x32xf32>
    %c6 = arith.constant 6 : index
    %c0_57 = arith.constant 0 : index
    %c0_58 = arith.constant 0 : index
    %67 = vector.load %arg2[%c6, %c0_57, %c0_58] : memref<9x32x32xbf16, #tpu.memory_space<vmem>>, vector<1x32x32xbf16>
    %68 = vector.shape_cast %67 : vector<1x32x32xbf16> to vector<32x32xbf16>
    %cst_59 = arith.constant dense<0.000000e+00> : vector<32x32xf32>
    %69 = tpu.matmul %68, %17, %cst_59 {dimension_numbers = #tpu.dot_dimension_numbers<[1], [0], [0], [1], [0, 0, 1, 1], [], []>} : vector<32x32xbf16>, vector<32x32xbf16>, vector<32x32xf32> -> vector<32x32xf32>
    %70 = arith.truncf %69 : vector<32x32xf32> to vector<32x32xbf16>
    %c0_60 = arith.constant 0 : index
    %c6_61 = arith.constant 6 : index
    %c0_62 = arith.constant 0 : index
    %c0_63 = arith.constant 0 : index
    %71 = vector.load %arg3[%c0_60, %c6_61, %c0_62, %c0_63] : memref<1x9x32x32xbf16, #tpu.memory_space<vmem>>, vector<1x1x32x32xbf16>
    %72 = vector.shape_cast %71 : vector<1x1x32x32xbf16> to vector<32x32xbf16>
    %cst_64 = arith.constant dense<0.000000e+00> : vector<32x32xf32>
    %73 = tpu.matmul %70, %72, %cst_64 {dimension_numbers = #tpu.dot_dimension_numbers<[1], [0], [0], [1], [0, 0, 1, 1], [], []>} : vector<32x32xbf16>, vector<32x32xbf16>, vector<32x32xf32> -> vector<32x32xf32>
    %74 = arith.addf %66, %73 : vector<32x32xf32>
    %c7 = arith.constant 7 : index
    %c0_65 = arith.constant 0 : index
    %c0_66 = arith.constant 0 : index
    %75 = vector.load %arg2[%c7, %c0_65, %c0_66] : memref<9x32x32xbf16, #tpu.memory_space<vmem>>, vector<1x32x32xbf16>
    %76 = vector.shape_cast %75 : vector<1x32x32xbf16> to vector<32x32xbf16>
    %cst_67 = arith.constant dense<0.000000e+00> : vector<32x32xf32>
    %77 = tpu.matmul %76, %17, %cst_67 {dimension_numbers = #tpu.dot_dimension_numbers<[1], [0], [0], [1], [0, 0, 1, 1], [], []>} : vector<32x32xbf16>, vector<32x32xbf16>, vector<32x32xf32> -> vector<32x32xf32>
    %78 = arith.truncf %77 : vector<32x32xf32> to vector<32x32xbf16>
    %c0_68 = arith.constant 0 : index
    %c7_69 = arith.constant 7 : index
    %c0_70 = arith.constant 0 : index
    %c0_71 = arith.constant 0 : index
    %79 = vector.load %arg3[%c0_68, %c7_69, %c0_70, %c0_71] : memref<1x9x32x32xbf16, #tpu.memory_space<vmem>>, vector<1x1x32x32xbf16>
    %80 = vector.shape_cast %79 : vector<1x1x32x32xbf16> to vector<32x32xbf16>
    %cst_72 = arith.constant dense<0.000000e+00> : vector<32x32xf32>
    %81 = tpu.matmul %78, %80, %cst_72 {dimension_numbers = #tpu.dot_dimension_numbers<[1], [0], [0], [1], [0, 0, 1, 1], [], []>} : vector<32x32xbf16>, vector<32x32xbf16>, vector<32x32xf32> -> vector<32x32xf32>
    %82 = arith.addf %74, %81 : vector<32x32xf32>
    %c8 = arith.constant 8 : index
    %c0_73 = arith.constant 0 : index
    %c0_74 = arith.constant 0 : index
    %83 = vector.load %arg2[%c8, %c0_73, %c0_74] : memref<9x32x32xbf16, #tpu.memory_space<vmem>>, vector<1x32x32xbf16>
    %84 = vector.shape_cast %83 : vector<1x32x32xbf16> to vector<32x32xbf16>
    %cst_75 = arith.constant dense<0.000000e+00> : vector<32x32xf32>
    %85 = tpu.matmul %84, %17, %cst_75 {dimension_numbers = #tpu.dot_dimension_numbers<[1], [0], [0], [1], [0, 0, 1, 1], [], []>} : vector<32x32xbf16>, vector<32x32xbf16>, vector<32x32xf32> -> vector<32x32xf32>
    %86 = arith.truncf %85 : vector<32x32xf32> to vector<32x32xbf16>
    %c0_76 = arith.constant 0 : index
    %c8_77 = arith.constant 8 : index
    %c0_78 = arith.constant 0 : index
    %c0_79 = arith.constant 0 : index
    %87 = vector.load %arg3[%c0_76, %c8_77, %c0_78, %c0_79] : memref<1x9x32x32xbf16, #tpu.memory_space<vmem>>, vector<1x1x32x32xbf16>
    %88 = vector.shape_cast %87 : vector<1x1x32x32xbf16> to vector<32x32xbf16>
    %cst_80 = arith.constant dense<0.000000e+00> : vector<32x32xf32>
    %89 = tpu.matmul %86, %88, %cst_80 {dimension_numbers = #tpu.dot_dimension_numbers<[1], [0], [0], [1], [0, 0, 1, 1], [], []>} : vector<32x32xbf16>, vector<32x32xbf16>, vector<32x32xf32> -> vector<32x32xf32>
    %90 = arith.addf %82, %89 : vector<32x32xf32>
    %c0_81 = arith.constant 0 : index
    %c0_82 = arith.constant 0 : index
    %c0_83 = arith.constant 0 : index
    %91 = vector.load %arg4[%c0_81, %c0_82, %c0_83] : memref<1x1x32xf32, #tpu.memory_space<vmem>>, vector<1x1x32xf32>
    %92 = vector.shape_cast %91 : vector<1x1x32xf32> to vector<1x32xf32>
    %93 = vector.broadcast %92 : vector<1x32xf32> to vector<32x32xf32>
    %94 = arith.mulf %90, %93 : vector<32x32xf32>
    %c0_84 = arith.constant 0 : index
    %c0_85 = arith.constant 0 : index
    %c0_86 = arith.constant 0 : index
    %95 = vector.load %arg5[%c0_84, %c0_85, %c0_86] : memref<1x1x32xf32, #tpu.memory_space<vmem>>, vector<1x1x32xf32>
    %96 = vector.shape_cast %95 : vector<1x1x32xf32> to vector<1x32xf32>
    %97 = vector.broadcast %96 : vector<1x32xf32> to vector<32x32xf32>
    %98 = arith.addf %94, %97 : vector<32x32xf32>
    %c2_i32_87 = arith.constant 2 : i32
    %99 = arith.cmpi sge, %arg0, %c2_i32_87 : i32
    %c2_i32_88 = arith.constant 2 : i32
    %c0_i32_89 = arith.constant 0 : i32
    %100 = arith.cmpi eq, %c2_i32_88, %c0_i32_89 : i32
    %c1_i32_90 = arith.constant 1 : i32
    %101 = arith.select %100, %c1_i32_90, %c2_i32_88 : i32
    %102 = arith.remsi %arg0, %101 : i32
    %c0_i32_91 = arith.constant 0 : i32
    %103 = arith.cmpi ne, %102, %c0_i32_91 : i32
    %c0_i32_92 = arith.constant 0 : i32
    %104 = arith.cmpi slt, %102, %c0_i32_92 : i32
    %c0_i32_93 = arith.constant 0 : i32
    %105 = arith.cmpi slt, %101, %c0_i32_93 : i32
    %106 = arith.xori %104, %105 : i1
    %107 = arith.andi %106, %103 : i1
    %108 = arith.addi %102, %101 : i32
    %109 = arith.select %107, %108, %102 : i32
    %c0_i32_94 = arith.constant 0 : i32
    %110 = arith.cmpi eq, %109, %c0_i32_94 : i32
    %111 = arith.andi %99, %110 : i1
    %112 = arith.extui %111 : i1 to i32
    %113 = arith.sitofp %112 : i32 to f32
    %c0_95 = arith.constant 0 : index
    %c0_96 = arith.constant 0 : index
    %114 = vector.load %arg8[%c0_95, %c0_96] : memref<32x32xf32, #tpu.memory_space<vmem>>, vector<32x32xf32>
    %115 = vector.broadcast %113 : f32 to vector<32x32xf32>
    %116 = arith.mulf %115, %114 : vector<32x32xf32>
    %117 = arith.addf %98, %116 : vector<32x32xf32>
    %cst_97 = arith.constant 0.000000e+00 : f32
    %118 = vector.broadcast %cst_97 : f32 to vector<32x32xf32>
    %119 = arith.maximumf %117, %118 : vector<32x32xf32>
    %c0_98 = arith.constant 0 : index
    %c0_99 = arith.constant 0 : index
    %120 = vector.load %arg7[%c0_98, %c0_99] : memref<32x32xf32, #tpu.memory_space<vmem>>, vector<32x32xf32>
    tpu.vector_store %arg7[%c0_98, %c0_99], %119 {strides = array<i32>} : memref<32x32xf32, #tpu.memory_space<vmem>>, vector<32x32xf32>,
    %c4_i32 = arith.constant 4 : i32
    %121 = arith.cmpi eq, %arg0, %c4_i32 : i32
    %122 = arith.extui %121 : i1 to i32
    %c0_i32_100 = arith.constant 0 : i32
    %123 = arith.cmpi ne, %122, %c0_i32_100 : i32
    scf.if %123 {
      %c0_101 = arith.constant 0 : index
      %c0_102 = arith.constant 0 : index
      %124 = vector.load %arg7[%c0_101, %c0_102] : memref<32x32xf32, #tpu.memory_space<vmem>>, vector<32x32xf32>
      %c0_103 = arith.constant 0 : index
      %c0_104 = arith.constant 0 : index
      %125 = vector.load %arg6[%c0_103, %c0_104] : memref<32x32xf32, #tpu.memory_space<vmem>>, vector<32x32xf32>
      tpu.vector_store %arg6[%c0_103, %c0_104], %124 {strides = array<i32>} : memref<32x32xf32, #tpu.memory_space<vmem>>, vector<32x32xf32>,
    } else {
    }
    return
  }
  func.func @transform_0(%arg0: i32) -> (i32, i32) {
    %c0_i32 = arith.constant 0 : i32
    %c0_i32_0 = arith.constant 0 : i32
    %c0_i32_1 = arith.constant 0 : i32
    return %c0_i32, %c0_i32_0 : i32, i32
  }
  func.func @transform_1(%arg0: i32) -> (i32, i32, i32) {
    %c0_i32 = arith.constant 0 : i32
    %c0_i32_0 = arith.constant 0 : i32
    %c0_i32_1 = arith.constant 0 : i32
    %c0_i32_2 = arith.constant 0 : i32
    return %c0_i32, %c0_i32_0, %c0_i32_1 : i32, i32, i32
  }
  func.func @transform_2(%arg0: i32) -> (i32, i32, i32, i32) {
    %c0_i32 = arith.constant 0 : i32
    %c0_i32_0 = arith.constant 0 : i32
    %c0_i32_1 = arith.constant 0 : i32
    %c0_i32_2 = arith.constant 0 : i32
    return %arg0, %c0_i32, %c0_i32_0, %c0_i32_1 : i32, i32, i32, i32
  }
  func.func @transform_3(%arg0: i32) -> (i32, i32, i32) {
    %c0_i32 = arith.constant 0 : i32
    %c0_i32_0 = arith.constant 0 : i32
    %c0_i32_1 = arith.constant 0 : i32
    return %arg0, %c0_i32, %c0_i32_0 : i32, i32, i32
  }
  func.func @transform_4(%arg0: i32) -> (i32, i32, i32) {
    %c0_i32 = arith.constant 0 : i32
    %c0_i32_0 = arith.constant 0 : i32
    %c0_i32_1 = arith.constant 0 : i32
    return %arg0, %c0_i32, %c0_i32_0 : i32, i32, i32
  }
  func.func @transform_5(%arg0: i32) -> (i32, i32) {
    %c0_i32 = arith.constant 0 : i32
    %c0_i32_0 = arith.constant 0 : i32
    %c0_i32_1 = arith.constant 0 : i32
    return %c0_i32, %c0_i32_0 : i32, i32
  }
}

module attributes {stable_mosaic.version = 11 : i64} {
  func.func @_heads_kernel(%arg0: i32, %arg1: memref<32x32xf32, #tpu.memory_space<vmem>>, %arg2: memref<2x32xbf16, #tpu.memory_space<vmem>>, %arg3: memref<32x2xbf16, #tpu.memory_space<vmem>>, %arg4: memref<1x2xf32, #tpu.memory_space<vmem>>, %arg5: memref<1x2xf32, #tpu.memory_space<vmem>>, %arg6: memref<2x32x128xbf16, #tpu.memory_space<vmem>>, %arg7: memref<1x128xf32, #tpu.memory_space<vmem>>, %arg8: memref<32x1xbf16, #tpu.memory_space<vmem>>, %arg9: memref<1x1xf32, #tpu.memory_space<vmem>>, %arg10: memref<1x1xf32, #tpu.memory_space<vmem>>, %arg11: memref<32x32xbf16, #tpu.memory_space<vmem>>, %arg12: memref<1x32xf32, #tpu.memory_space<vmem>>, %arg13: memref<32x128xbf16, #tpu.memory_space<vmem>>, %arg14: memref<1x128xf32, #tpu.memory_space<vmem>>, %arg15: memref<2x128xf32, #tpu.memory_space<vmem>>, %arg16: memref<2x128xf32, #tpu.memory_space<vmem>>) attributes {dimension_semantics = [#tpu.dimension_semantics<arbitrary>], iteration_bounds = array<i64: 1>, scalar_prefetch = 0 : i64, scratch_operands = 0 : i64, tpu.core_type = #tpu.core_type<tc>, window_params = [{pipeline_mode = #tpu.pipeline_mode<synchronous>, transform_indices = @transform_0, window_bounds = array<i64: 32, 32>}, {pipeline_mode = #tpu.pipeline_mode<synchronous>, transform_indices = @transform_1, window_bounds = array<i64: 2, 32>}, {pipeline_mode = #tpu.pipeline_mode<synchronous>, transform_indices = @transform_2, window_bounds = array<i64: 32, 2>}, {pipeline_mode = #tpu.pipeline_mode<synchronous>, transform_indices = @transform_3, window_bounds = array<i64: 1, 2>}, {pipeline_mode = #tpu.pipeline_mode<synchronous>, transform_indices = @transform_4, window_bounds = array<i64: 1, 2>}, {pipeline_mode = #tpu.pipeline_mode<synchronous>, transform_indices = @transform_5, window_bounds = array<i64: 2, 32, 128>}, {pipeline_mode = #tpu.pipeline_mode<synchronous>, transform_indices = @transform_6, window_bounds = array<i64: 1, 128>}, {pipeline_mode = #tpu.pipeline_mode<synchronous>, transform_indices = @transform_7, window_bounds = array<i64: 32, 1>}, {pipeline_mode = #tpu.pipeline_mode<synchronous>, transform_indices = @transform_8, window_bounds = array<i64: 1, 1>}, {pipeline_mode = #tpu.pipeline_mode<synchronous>, transform_indices = @transform_9, window_bounds = array<i64: 1, 1>}, {pipeline_mode = #tpu.pipeline_mode<synchronous>, transform_indices = @transform_10, window_bounds = array<i64: 32, 32>}, {pipeline_mode = #tpu.pipeline_mode<synchronous>, transform_indices = @transform_11, window_bounds = array<i64: 1, 32>}, {pipeline_mode = #tpu.pipeline_mode<synchronous>, transform_indices = @transform_12, window_bounds = array<i64: 32, 128>}, {pipeline_mode = #tpu.pipeline_mode<synchronous>, transform_indices = @transform_13, window_bounds = array<i64: 1, 128>}, {pipeline_mode = #tpu.pipeline_mode<synchronous>, transform_indices = @transform_14, window_bounds = array<i64: 2, 128>}, {pipeline_mode = #tpu.pipeline_mode<synchronous>, transform_indices = @transform_15, window_bounds = array<i64: 2, 128>}]} {
    %c0 = arith.constant 0 : index
    %c0_0 = arith.constant 0 : index
    %0 = vector.load %arg1[%c0, %c0_0] : memref<32x32xf32, #tpu.memory_space<vmem>>, vector<32x32xf32>
    %1 = arith.truncf %0 : vector<32x32xf32> to vector<32x32xbf16>
    %c0_1 = arith.constant 0 : index
    %c0_2 = arith.constant 0 : index
    %2 = vector.load %arg2[%c0_1, %c0_2] : memref<2x32xbf16, #tpu.memory_space<vmem>>, vector<2x32xbf16>
    %c0_3 = arith.constant 0 : index
    %c0_4 = arith.constant 0 : index
    %3 = vector.load %arg3[%c0_3, %c0_4] : memref<32x2xbf16, #tpu.memory_space<vmem>>, vector<32x2xbf16>
    %cst = arith.constant dense<0.000000e+00> : vector<32x2xf32>
    %4 = tpu.matmul %1, %3, %cst {dimension_numbers = #tpu.dot_dimension_numbers<[1], [0], [0], [1], [0, 0, 1, 1], [], []>} : vector<32x32xbf16>, vector<32x2xbf16>, vector<32x2xf32> -> vector<32x2xf32>
    %c0_5 = arith.constant 0 : index
    %c0_6 = arith.constant 0 : index
    %5 = vector.load %arg4[%c0_5, %c0_6] : memref<1x2xf32, #tpu.memory_space<vmem>>, vector<1x2xf32>
    %6 = vector.broadcast %5 : vector<1x2xf32> to vector<32x2xf32>
    %7 = arith.mulf %4, %6 : vector<32x2xf32>
    %c0_7 = arith.constant 0 : index
    %c0_8 = arith.constant 0 : index
    %8 = vector.load %arg5[%c0_7, %c0_8] : memref<1x2xf32, #tpu.memory_space<vmem>>, vector<1x2xf32>
    %9 = vector.broadcast %8 : vector<1x2xf32> to vector<32x2xf32>
    %10 = arith.addf %7, %9 : vector<32x2xf32>
    %cst_9 = arith.constant 0.000000e+00 : f32
    %11 = vector.broadcast %cst_9 : f32 to vector<32x2xf32>
    %12 = arith.maximumf %10, %11 : vector<32x2xf32>
    %c0_10 = arith.constant 0 : index
    %c0_11 = arith.constant 0 : index
    %c0_12 = arith.constant 0 : index
    %13 = vector.load %arg6[%c0_10, %c0_11, %c0_12] : memref<2x32x128xbf16, #tpu.memory_space<vmem>>, vector<1x32x128xbf16>
    %14 = vector.shape_cast %13 : vector<1x32x128xbf16> to vector<32x128xbf16>
    %15 = arith.extf %14 : vector<32x128xbf16> to vector<32x128xf32>
    %c1 = arith.constant 1 : index
    %c0_13 = arith.constant 0 : index
    %c0_14 = arith.constant 0 : index
    %16 = vector.load %arg6[%c1, %c0_13, %c0_14] : memref<2x32x128xbf16, #tpu.memory_space<vmem>>, vector<1x32x128xbf16>
    %17 = vector.shape_cast %16 : vector<1x32x128xbf16> to vector<32x128xbf16>
    %18 = arith.extf %17 : vector<32x128xbf16> to vector<32x128xf32>
    %19 = vector.extract_strided_slice %12 {offsets = [0, 0], sizes = [32, 1], strides = [1, 1]} : vector<32x2xf32> to vector<32x1xf32>
    %20 = vector.broadcast %19 : vector<32x1xf32> to vector<32x128xf32>
    %21 = arith.mulf %20, %15 : vector<32x128xf32>
    %22 = vector.extract_strided_slice %12 {offsets = [0, 1], sizes = [32, 1], strides = [1, 1]} : vector<32x2xf32> to vector<32x1xf32>
    %23 = vector.broadcast %22 : vector<32x1xf32> to vector<32x128xf32>
    %24 = arith.mulf %23, %18 : vector<32x128xf32>
    %25 = arith.addf %21, %24 : vector<32x128xf32>
    %26 = arith.truncf %25 : vector<32x128xf32> to vector<32x128xbf16>
    %cst_15 = arith.constant dense<0.000000e+00> : vector<2x128xf32>
    %27 = tpu.matmul %2, %26, %cst_15 {dimension_numbers = #tpu.dot_dimension_numbers<[1], [0], [0], [1], [0, 0, 1, 1], [], []>} : vector<2x32xbf16>, vector<32x128xbf16>, vector<2x128xf32> -> vector<2x128xf32>
    %c0_16 = arith.constant 0 : index
    %c0_17 = arith.constant 0 : index
    %28 = vector.load %arg7[%c0_16, %c0_17] : memref<1x128xf32, #tpu.memory_space<vmem>>, vector<1x128xf32>
    %29 = vector.broadcast %28 : vector<1x128xf32> to vector<2x128xf32>
    %30 = arith.addf %27, %29 : vector<2x128xf32>
    %cst_18 = arith.constant dense<0xFF800000> : vector<2xf32>
    %31 = vector.multi_reduction <maximumf>, %30, %cst_18 [1] : vector<2x128xf32> to vector<2xf32>
    %32 = vector.shape_cast %31 : vector<2xf32> to vector<2x1xf32>
    %33 = vector.broadcast %32 : vector<2x1xf32> to vector<2x128xf32>
    %34 = arith.subf %30, %33 : vector<2x128xf32>
    %35 = math.exp %34 : vector<2x128xf32>
    %cst_19 = arith.constant dense<0.000000e+00> : vector<2xf32>
    %36 = vector.multi_reduction <add>, %35, %cst_19 [1] : vector<2x128xf32> to vector<2xf32>
    %37 = vector.shape_cast %36 : vector<2xf32> to vector<2x1xf32>
    %38 = math.log %37 : vector<2x1xf32>
    %39 = arith.addf %38, %32 : vector<2x1xf32>
    %40 = vector.broadcast %39 : vector<2x1xf32> to vector<2x128xf32>
    %41 = arith.subf %30, %40 : vector<2x128xf32>
    %c0_20 = arith.constant 0 : index
    %c0_21 = arith.constant 0 : index
    %42 = vector.load %arg15[%c0_20, %c0_21] : memref<2x128xf32, #tpu.memory_space<vmem>>, vector<2x128xf32>
    tpu.vector_store %arg15[%c0_20, %c0_21], %41 {strides = array<i32>} : memref<2x128xf32, #tpu.memory_space<vmem>>, vector<2x128xf32>,
    %c0_22 = arith.constant 0 : index
    %c0_23 = arith.constant 0 : index
    %43 = vector.load %arg8[%c0_22, %c0_23] : memref<32x1xbf16, #tpu.memory_space<vmem>>, vector<32x1xbf16>
    %cst_24 = arith.constant dense<0.000000e+00> : vector<32x1xf32>
    %44 = tpu.matmul %1, %43, %cst_24 {dimension_numbers = #tpu.dot_dimension_numbers<[1], [0], [0], [1], [0, 0, 1, 1], [], []>} : vector<32x32xbf16>, vector<32x1xbf16>, vector<32x1xf32> -> vector<32x1xf32>
    %c0_25 = arith.constant 0 : index
    %c0_26 = arith.constant 0 : index
    %45 = vector.load %arg9[%c0_25, %c0_26] : memref<1x1xf32, #tpu.memory_space<vmem>>, vector<1x1xf32>
    %46 = vector.broadcast %45 : vector<1x1xf32> to vector<32x1xf32>
    %47 = arith.mulf %44, %46 : vector<32x1xf32>
    %c0_27 = arith.constant 0 : index
    %c0_28 = arith.constant 0 : index
    %48 = vector.load %arg10[%c0_27, %c0_28] : memref<1x1xf32, #tpu.memory_space<vmem>>, vector<1x1xf32>
    %49 = vector.broadcast %48 : vector<1x1xf32> to vector<32x1xf32>
    %50 = arith.addf %47, %49 : vector<32x1xf32>
    %cst_29 = arith.constant 0.000000e+00 : f32
    %51 = vector.broadcast %cst_29 : f32 to vector<32x1xf32>
    %52 = arith.maximumf %50, %51 : vector<32x1xf32>
    %c0_30 = arith.constant 0 : index
    %c0_31 = arith.constant 0 : index
    %53 = vector.load %arg11[%c0_30, %c0_31] : memref<32x32xbf16, #tpu.memory_space<vmem>>, vector<32x32xbf16>
    %54 = arith.extf %53 : vector<32x32xbf16> to vector<32x32xf32>
    %55 = vector.broadcast %52 : vector<32x1xf32> to vector<32x32xf32>
    %56 = arith.mulf %55, %54 : vector<32x32xf32>
    %57 = arith.truncf %56 : vector<32x32xf32> to vector<32x32xbf16>
    %cst_32 = arith.constant dense<0.000000e+00> : vector<2x32xf32>
    %58 = tpu.matmul %2, %57, %cst_32 {dimension_numbers = #tpu.dot_dimension_numbers<[1], [0], [0], [1], [0, 0, 1, 1], [], []>} : vector<2x32xbf16>, vector<32x32xbf16>, vector<2x32xf32> -> vector<2x32xf32>
    %c0_33 = arith.constant 0 : index
    %c0_34 = arith.constant 0 : index
    %59 = vector.load %arg12[%c0_33, %c0_34] : memref<1x32xf32, #tpu.memory_space<vmem>>, vector<1x32xf32>
    %60 = vector.broadcast %59 : vector<1x32xf32> to vector<2x32xf32>
    %61 = arith.addf %58, %60 : vector<2x32xf32>
    %cst_35 = arith.constant 0.000000e+00 : f32
    %62 = vector.broadcast %cst_35 : f32 to vector<2x32xf32>
    %63 = arith.maximumf %61, %62 : vector<2x32xf32>
    %64 = arith.truncf %63 : vector<2x32xf32> to vector<2x32xbf16>
    %c0_36 = arith.constant 0 : index
    %c0_37 = arith.constant 0 : index
    %65 = vector.load %arg13[%c0_36, %c0_37] : memref<32x128xbf16, #tpu.memory_space<vmem>>, vector<32x128xbf16>
    %cst_38 = arith.constant dense<0.000000e+00> : vector<2x128xf32>
    %66 = tpu.matmul %64, %65, %cst_38 {dimension_numbers = #tpu.dot_dimension_numbers<[1], [0], [0], [1], [0, 0, 1, 1], [], []>} : vector<2x32xbf16>, vector<32x128xbf16>, vector<2x128xf32> -> vector<2x128xf32>
    %c0_39 = arith.constant 0 : index
    %c0_40 = arith.constant 0 : index
    %67 = vector.load %arg14[%c0_39, %c0_40] : memref<1x128xf32, #tpu.memory_space<vmem>>, vector<1x128xf32>
    %68 = vector.broadcast %67 : vector<1x128xf32> to vector<2x128xf32>
    %69 = arith.addf %66, %68 : vector<2x128xf32>
    %70 = math.tanh %69 : vector<2x128xf32>
    %c0_41 = arith.constant 0 : index
    %c0_42 = arith.constant 0 : index
    %71 = vector.load %arg16[%c0_41, %c0_42] : memref<2x128xf32, #tpu.memory_space<vmem>>, vector<2x128xf32>
    tpu.vector_store %arg16[%c0_41, %c0_42], %70 {strides = array<i32>} : memref<2x128xf32, #tpu.memory_space<vmem>>, vector<2x128xf32>,
    return
  }
  func.func @transform_0(%arg0: i32) -> (i32, i32) {
    %c0_i32 = arith.constant 0 : i32
    %c0_i32_0 = arith.constant 0 : i32
    %c0_i32_1 = arith.constant 0 : i32
    return %c0_i32, %c0_i32_0 : i32, i32
  }
  func.func @transform_1(%arg0: i32) -> (i32, i32) {
    %c0_i32 = arith.constant 0 : i32
    %c0_i32_0 = arith.constant 0 : i32
    %c0_i32_1 = arith.constant 0 : i32
    return %c0_i32, %c0_i32_0 : i32, i32
  }
  func.func @transform_2(%arg0: i32) -> (i32, i32) {
    %c0_i32 = arith.constant 0 : i32
    %c0_i32_0 = arith.constant 0 : i32
    %c0_i32_1 = arith.constant 0 : i32
    return %c0_i32, %c0_i32_0 : i32, i32
  }
  func.func @transform_3(%arg0: i32) -> (i32, i32) {
    %c0_i32 = arith.constant 0 : i32
    %c0_i32_0 = arith.constant 0 : i32
    %c0_i32_1 = arith.constant 0 : i32
    return %c0_i32, %c0_i32_0 : i32, i32
  }
  func.func @transform_4(%arg0: i32) -> (i32, i32) {
    %c0_i32 = arith.constant 0 : i32
    %c0_i32_0 = arith.constant 0 : i32
    %c0_i32_1 = arith.constant 0 : i32
    return %c0_i32, %c0_i32_0 : i32, i32
  }
  func.func @transform_5(%arg0: i32) -> (i32, i32, i32) {
    %c0_i32 = arith.constant 0 : i32
    %c0_i32_0 = arith.constant 0 : i32
    %c0_i32_1 = arith.constant 0 : i32
    %c0_i32_2 = arith.constant 0 : i32
    return %c0_i32, %c0_i32_0, %c0_i32_1 : i32, i32, i32
  }
  func.func @transform_6(%arg0: i32) -> (i32, i32) {
    %c0_i32 = arith.constant 0 : i32
    %c0_i32_0 = arith.constant 0 : i32
    %c0_i32_1 = arith.constant 0 : i32
    return %c0_i32, %c0_i32_0 : i32, i32
  }
  func.func @transform_7(%arg0: i32) -> (i32, i32) {
    %c0_i32 = arith.constant 0 : i32
    %c0_i32_0 = arith.constant 0 : i32
    %c0_i32_1 = arith.constant 0 : i32
    return %c0_i32, %c0_i32_0 : i32, i32
  }
  func.func @transform_8(%arg0: i32) -> (i32, i32) {
    %c0_i32 = arith.constant 0 : i32
    %c0_i32_0 = arith.constant 0 : i32
    %c0_i32_1 = arith.constant 0 : i32
    return %c0_i32, %c0_i32_0 : i32, i32
  }
  func.func @transform_9(%arg0: i32) -> (i32, i32) {
    %c0_i32 = arith.constant 0 : i32
    %c0_i32_0 = arith.constant 0 : i32
    %c0_i32_1 = arith.constant 0 : i32
    return %c0_i32, %c0_i32_0 : i32, i32
  }
  func.func @transform_10(%arg0: i32) -> (i32, i32) {
    %c0_i32 = arith.constant 0 : i32
    %c0_i32_0 = arith.constant 0 : i32
    %c0_i32_1 = arith.constant 0 : i32
    return %c0_i32, %c0_i32_0 : i32, i32
  }
  func.func @transform_11(%arg0: i32) -> (i32, i32) {
    %c0_i32 = arith.constant 0 : i32
    %c0_i32_0 = arith.constant 0 : i32
    %c0_i32_1 = arith.constant 0 : i32
    return %c0_i32, %c0_i32_0 : i32, i32
  }
  func.func @transform_12(%arg0: i32) -> (i32, i32) {
    %c0_i32 = arith.constant 0 : i32
    %c0_i32_0 = arith.constant 0 : i32
    %c0_i32_1 = arith.constant 0 : i32
    return %c0_i32, %c0_i32_0 : i32, i32
  }
  func.func @transform_13(%arg0: i32) -> (i32, i32) {
    %c0_i32 = arith.constant 0 : i32
    %c0_i32_0 = arith.constant 0 : i32
    %c0_i32_1 = arith.constant 0 : i32
    return %c0_i32, %c0_i32_0 : i32, i32
  }
  func.func @transform_14(%arg0: i32) -> (i32, i32) {
    %c0_i32 = arith.constant 0 : i32
    %c0_i32_0 = arith.constant 0 : i32
    %c0_i32_1 = arith.constant 0 : i32
    return %c0_i32, %c0_i32_0 : i32, i32
  }
  func.func @transform_15(%arg0: i32) -> (i32, i32) {
    %c0_i32 = arith.constant 0 : i32
    %c0_i32_0 = arith.constant 0 : i32
    %c0_i32_1 = arith.constant 0 : i32
    return %c0_i32, %c0_i32_0 : i32, i32
  }
}

</mosaic_0001>

<llo_original>
// kernel: network_forward.3
$region0: #{network_forward.3}
  #allocation0 [shape = 'u32[]', space=smem, size = 0x4, offset = 0x4, fixed_abs, tag = 'smem constant byte address 0x4 - core index']
  #allocation1 [shape = 'u32[144,128]{1,0:T(1,128)}', space=vmem, size = 0x12000, scoped, tag = 'internal scratch']
  #allocation2 [shape = 'f32[1,1]{1,0:T(1,128)S(1)}', space=vmem, size = 0x200, scoped, tag = 'scoped memory for network_forward.3']
  #allocation3 [shape = 'f32[1,1]{1,0:T(1,128)S(1)}', space=vmem, size = 0x200, scoped, tag = 'scoped memory for network_forward.3']
  %s0 = inlined_call_operand.vmem [shape: f32[32,32], index: 0, kind: input, shape index: {}]
  %s1 = inlined_call_operand.vmem [shape: bf16[2,32], index: 1, kind: input, shape index: {}]
  %s2 = inlined_call_operand.vmem [shape: bf16[32,2], index: 2, kind: input, shape index: {}]
  %s3 = inlined_call_operand.vmem [shape: f32[1,2], index: 3, kind: input, shape index: {}]
  %s4 = inlined_call_operand.vmem [shape: f32[1,2], index: 4, kind: input, shape index: {}]
  %s5 = inlined_call_operand.vmem [shape: bf16[2,32,128], index: 5, kind: input, shape index: {}]
  %s6 = inlined_call_operand.vmem [shape: f32[1,128], index: 6, kind: input, shape index: {}]
  %s7 = inlined_call_operand.vmem [shape: bf16[32,1], index: 7, kind: input, shape index: {}]
  %s8 = inlined_call_operand.<no memory space> [shape: f32[1,1], index: 8, kind: input, shape index: {}]
  %s9 = inlined_call_operand.<no memory space> [shape: f32[1,1], index: 9, kind: input, shape index: {}]
  %s10 = inlined_call_operand.vmem [shape: bf16[32,32], index: 10, kind: input, shape index: {}]
  %s11 = inlined_call_operand.vmem [shape: f32[1,32], index: 11, kind: input, shape index: {}]
  %s12 = inlined_call_operand.vmem [shape: bf16[32,128], index: 12, kind: input, shape index: {}]
  %s13 = inlined_call_operand.vmem [shape: f32[1,128], index: 13, kind: input, shape index: {}]
  %s14 = inlined_call_operand.hbm [shape: f32[2,128], index: 14, kind: output, shape index: {0}]
  %s15 = inlined_call_operand.vmem [shape: f32[2,128], index: 15, kind: output, shape index: {1}]
  %16 = xla_tuple %s14, %s15
  %s17 = sld [smem:[#allocation0]]
  $region74: #{network_forward.3} parent=0
    _
  %s19 = ssub.s32 1, %s17
  %s20 = scalar_select 0, %s19, %s17
  %v21 = vstv %s8
  %22 = vst [vmem:[#allocation2] sm:$0x1] %v21
  %v23 = vstv %s9
  %24 = vst [vmem:[#allocation3] sm:$0x1] %v23
  $region1: #{network_forward.3} parent=0
    #allocation4 [shape = 'u8[1024]{0}', space=vmem, size = 0x400, scoped, tag = 'output window, operand 0, single buffered']
    #allocation5 [shape = 's32[1]{0}', space=sflag, size = 0x4, scoped, tag = 'scoped memory for network_forward.3']
    %25 = vsyncpa [#allocation5], 0
    // Predicated region
    $region2: #{network_forward.3} parent=1 // pred_check
      _
    $region3: #{network_forward.3} parent=1 // pred_check_branch
      %27 = sbr.rel (0) target = $region5
    $region4: #{network_forward.3} parent=1 // pred_region
      _
    $region5: #{network_forward.3} parent=1 // pred_fallthru
      _
    // Predicated region
    $region6: #{network_forward.3} parent=1 // pred_check
      _
    $region7: #{network_forward.3} parent=1 // pred_check_branch
      %29 = sbr.rel (0) target = $region9
    $region8: #{network_forward.3} parent=1 // pred_region
      _
    $region9: #{network_forward.3} parent=1 // pred_fallthru
      _
    // Predicated region
    $region10: #{network_forward.3} parent=1 // pred_check
      _
    $region11: #{network_forward.3} parent=1 // pred_check_branch
      %31 = sbr.rel (0) target = $region13
    $region12: #{network_forward.3} parent=1 // pred_region
      _
    $region13: #{network_forward.3} parent=1 // pred_fallthru
      _
    // Predicated region
    $region14: #{network_forward.3} parent=1 // pred_check
      _
    $region15: #{network_forward.3} parent=1 // pred_check_branch
      %33 = sbr.rel (0) target = $region17
    $region16: #{network_forward.3} parent=1 // pred_region
      _
    $region17: #{network_forward.3} parent=1 // pred_fallthru
      _
    // Predicated region
    $region18: #{network_forward.3} parent=1 // pred_check
      _
    $region19: #{network_forward.3} parent=1 // pred_check_branch
      %35 = sbr.rel (0) target = $region21
    $region20: #{network_forward.3} parent=1 // pred_region
      _
    $region21: #{network_forward.3} parent=1 // pred_fallthru
      _
    // Predicated region
    $region22: #{network_forward.3} parent=1 // pred_check
      _
    $region23: #{network_forward.3} parent=1 // pred_check_branch
      %37 = sbr.rel (0) target = $region25
    $region24: #{network_forward.3} parent=1 // pred_region
      _
    $region25: #{network_forward.3} parent=1 // pred_fallthru
      _
    // Predicated region
    $region26: #{network_forward.3} parent=1 // pred_check
      _
    $region27: #{network_forward.3} parent=1 // pred_check_branch
      %39 = sbr.rel (0) target = $region29
    $region28: #{network_forward.3} parent=1 // pred_region
      _
    $region29: #{network_forward.3} parent=1 // pred_fallthru
      _
    // Predicated region
    $region30: #{network_forward.3} parent=1 // pred_check
      _
    $region31: #{network_forward.3} parent=1 // pred_check_branch
      %41 = sbr.rel (0) target = $region33
    $region32: #{network_forward.3} parent=1 // pred_region
      _
    $region33: #{network_forward.3} parent=1 // pred_fallthru
      _
    // Predicated region
    $region34: #{network_forward.3} parent=1 // pred_check
      _
    $region35: #{network_forward.3} parent=1 // pred_check_branch
      %43 = sbr.rel (0) target = $region37
    $region36: #{network_forward.3} parent=1 // pred_region
      _
    $region37: #{network_forward.3} parent=1 // pred_fallthru
      _
    // Predicated region
    $region38: #{network_forward.3} parent=1 // pred_check
      _
    $region39: #{network_forward.3} parent=1 // pred_check_branch
      %45 = sbr.rel (0) target = $region41
    $region40: #{network_forward.3} parent=1 // pred_region
      _
    $region41: #{network_forward.3} parent=1 // pred_fallthru
      _
    // Predicated region
    $region42: #{network_forward.3} parent=1 // pred_check
      _
    $region43: #{network_forward.3} parent=1 // pred_check_branch
      %47 = sbr.rel (0) target = $region45
    $region44: #{network_forward.3} parent=1 // pred_region
      _
    $region45: #{network_forward.3} parent=1 // pred_fallthru
      _
    // Predicated region
    $region46: #{network_forward.3} parent=1 // pred_check
      _
    $region47: #{network_forward.3} parent=1 // pred_check_branch
      %49 = sbr.rel (0) target = $region49
    $region48: #{network_forward.3} parent=1 // pred_region
      _
    $region49: #{network_forward.3} parent=1 // pred_fallthru
      _
    // Predicated region
    $region50: #{network_forward.3} parent=1 // pred_check
      _
    $region51: #{network_forward.3} parent=1 // pred_check_branch
      %51 = sbr.rel (0) target = $region53
    $region52: #{network_forward.3} parent=1 // pred_region
      _
    $region53: #{network_forward.3} parent=1 // pred_fallthru
      _
    // Predicated region
    $region54: #{network_forward.3} parent=1 // pred_check
      _
    $region55: #{network_forward.3} parent=1 // pred_check_branch
      %53 = sbr.rel (0) target = $region57
    $region56: #{network_forward.3} parent=1 // pred_region
      _
    $region57: #{network_forward.3} parent=1 // pred_fallthru
      _
    %v55 = vld [vmem:[%s0] sm:$0xff]
    %v56 = vld [vmem:[%s0 + $0x8] sm:$0xff]
    %v57 = vld [vmem:[%s0 + $0x10] sm:$0xff]
    %v58 = vld [vmem:[%s0 + $0x18] sm:$0xff]
    %v59 = vpack.c.bf16 %v56, %v55
    %v60 = vpack.c.bf16 %v58, %v57
    %v61 = vld [vmem:[%s1] sm:$0x1]
    %v62 = vld [vmem:[%s2] sm:$0xf]
    %v63 = vld [vmem:[%s2 + $0x4] sm:$0xf]
    %v64 = vld [vmem:[%s2 + $0x8] sm:$0xf]
    %v65 = vld [vmem:[%s2 + $0xc] sm:$0xf]
    %v70 = vunpack.c.l.b16 %v62
    %v71 = vunpack.c.l.b16 %v63
    %v72 = vunpack.c.l.b16 %v64
    %v73 = vunpack.c.l.b16 %v65
    %v74 = vpack.c.b16 %v71, %v70
    %v75 = vpack.c.b16 %v73, %v72
    %vm78 = vcmask 261120
    %v80 = vsel %vm78, %v59, 0
    %v83 = vsel %vm78, %v60, 0
    %85 = vmatprep.subr.bf16.mxu0 0
    %86 = vmatpush1.bf16.msra.mxu0 %v74
    %87 = vmatprep.subr.bf16.mxu0 0
    %88 = vmatpush1.bf16.msra.mxu0 %v75
    %89 = vmatprep.subr.bf16.mxu0 0
    %90 = vmatpush1.bf16.msra.mxu0 0
    %91 = vmatprep.subr.bf16.mxu0 0
    %92 = vmatpush1.bf16.msra.mxu0 0
    %93 = vmatprep.subr.bf16.mxu0 0
    %94 = vmatpush1.bf16.msra.mxu0 0
    %95 = vmatprep.subr.bf16.mxu0 0
    %96 = vmatpush1.bf16.msra.mxu0 0
    %97 = vmatprep.subr.bf16.mxu0 0
    %98 = vmatpush1.bf16.msra.mxu0 0
    %99 = vmatprep.subr.bf16.mxu0 0
    %100 = vmatpush1.bf16.msra.mxu0 0
    %101 = vmatprep.subr.bf16.mxu0 0
    %102 = vmatpush1.bf16.msra.mxu0 0
    %103 = vmatprep.subr.bf16.mxu0 0
    %104 = vmatpush1.bf16.msra.mxu0 0
    %105 = vmatprep.subr.bf16.mxu0 0
    %106 = vmatpush1.bf16.msra.mxu0 0
    %107 = vmatprep.subr.bf16.mxu0 0
    %108 = vmatpush1.bf16.msra.mxu0 0
    %109 = vmatprep.subr.bf16.mxu0 0
    %110 = vmatpush1.bf16.msra.mxu0 0
    %111 = vmatprep.subr.bf16.mxu0 0
    %112 = vmatpush1.bf16.msra.mxu0 0
    %113 = vmatprep.subr.bf16.mxu0 0
    %114 = vmatpush1.bf16.msra.mxu0 0
    %115 = vmatprep.subr.bf16.mxu0 0
    %116 = vmatpush1.bf16.msra.mxu0 0
    %117 = vmatprep.mubr.bf16.mxu0 0
    %118 = vmatmul.mubr.bf16.gmra.mrb[0].mxu0 %v80
    %v119 = vpop.f32.mrb[0].mxu0
    %v120 = vadd.f32 0.0, %v119
    %v121 = vpop.f32.mrb[0].mxu0
    %v122 = vpop.f32.mrb[0].mxu0
    %v123 = vadd.f32 0.0, %v122
    %v124 = vpop.f32.mrb[0].mxu0
    %125 = vmatprep.mubr.bf16.mxu0 0
    %126 = vmatmul.mubr.bf16.gmra.mrb[0].mxu0 %v83
    %v127 = vpop.f32.mrb[0].mxu0
    %v128 = vadd.f32 0.0, %v127
    %v129 = vpop.f32.mrb[0].mxu0
    %v130 = vpop.f32.mrb[0].mxu0
    %v131 = vadd.f32 0.0, %v130
    %v132 = vpop.f32.mrb[0].mxu0
    %133 = vdwg.mxu0
    %v134 = vld [vmem:[%s3] sm:$0x1]
    %v136 = vlaneseq
    %v137 = vshrl.u32 %v136, 7
    %v138 = vsub.s32 0, %v137
    %v139 = vrot.slane %v134, %v138
    %v141 = vmul.f32 %v120, %v139
    %v142 = vmul.f32 %v123, %v139
    %v143 = vmul.f32 %v128, %v139
    %v144 = vmul.f32 %v131, %v139
    %v145 = vld [vmem:[%s4] sm:$0x1]
    %v147 = vlaneseq
    %v148 = vshrl.u32 %v147, 7
    %v149 = vsub.s32 0, %v148
    %v150 = vrot.slane %v145, %v149
    %v152 = vadd.f32 %v141, %v150
    %v153 = vadd.f32 %v142, %v150
    %v154 = vadd.f32 %v143, %v150
    %v155 = vadd.f32 %v144, %v150
    %v156 = vmax.f32 %v152, 0.0
    %v157 = vmax.f32 %v153, 0.0
    %v158 = vmax.f32 %v154, 0.0
    %v159 = vmax.f32 %v155, 0.0
    %v160 = vld [vmem:[%s5] sm:$0xf]
    %v161 = vld [vmem:[%s5 + $0x4] sm:$0xf]
    %v162 = vld [vmem:[%s5 + $0x8] sm:$0xf]
    %v163 = vld [vmem:[%s5 + $0xc] sm:$0xf]
    %v164 = vunpack.c.l.bf16 %v160
    %v165 = vunpack.c.l.bf16 %v161
    %v166 = vunpack.c.l.bf16 %v162
    %v167 = vunpack.c.l.bf16 %v163
    %s168 = scalar_lea.vmem %s5, 16
    %v169 = vld [vmem:[%s168] sm:$0xf]
    %v170 = vld [vmem:[%s168 + $0x4] sm:$0xf]
    %v171 = vld [vmem:[%s168 + $0x8] sm:$0xf]
    %v172 = vld [vmem:[%s168 + $0xc] sm:$0xf]
    %v173 = vunpack.c.l.bf16 %v169
    %v174 = vunpack.c.l.bf16 %v170
    %v175 = vunpack.c.l.bf16 %v171
    %v176 = vunpack.c.l.bf16 %v172
    %178 = vset.pattern.permute.xlu0 0
    %179 = vperm.xlu0 %178, %v156
    %v180 = vpop.permute.xlu0 %179
    %183 = vset.pattern.permute.xlu0 0
    %184 = vperm.xlu0 %183, %v157
    %v185 = vpop.permute.xlu0 %184
    %188 = vset.pattern.permute.xlu0 0
    %189 = vperm.xlu0 %188, %v158
    %v190 = vpop.permute.xlu0 %189
    %193 = vset.pattern.permute.xlu0 0
    %194 = vperm.xlu0 %193, %v159
    %v195 = vpop.permute.xlu0 %194
    %v197 = vmul.f32 %v180, %v164
    %v198 = vmul.f32 %v185, %v165
    %v199 = vmul.f32 %v190, %v166
    %v200 = vmul.f32 %v195, %v167
    %201 = vset.pattern.permute.xlu0 1
    %202 = vperm.xlu0 %201, %v156
    %v203 = vpop.permute.xlu0 %202
    %205 = vset.pattern.permute.xlu0 1
    %206 = vperm.xlu0 %205, %v157
    %v207 = vpop.permute.xlu0 %206
    %209 = vset.pattern.permute.xlu0 1
    %210 = vperm.xlu0 %209, %v158
    %v211 = vpop.permute.xlu0 %210
    %213 = vset.pattern.permute.xlu0 1
    %214 = vperm.xlu0 %213, %v159
    %v215 = vpop.permute.xlu0 %214
    %v217 = vmul.f32 %v203, %v173
    %v218 = vmul.f32 %v207, %v174
    %v219 = vmul.f32 %v211, %v175
    %v220 = vmul.f32 %v215, %v176
    %v221 = vadd.f32 %v197, %v217
    %v222 = vadd.f32 %v198, %v218
    %v223 = vadd.f32 %v199, %v219
    %v224 = vadd.f32 %v200, %v220
    %v225 = vpack.c.bf16 %v222, %v221
    %v226 = vpack.c.bf16 %v224, %v223
    %v227 = vld [vmem:[%s6] sm:$0x1]
    %v229 = vlaneseq
    %v230 = vshrl.u32 %v229, 7
    %v231 = vsub.s32 0, %v230
    %v232 = vrot.slane %v227, %v231
    %v235 = vsel %vm78, %v61, 0
    %237 = vmatprep.subr.bf16.mxu0 0
    %238 = vmatpush1.bf16.msra.mxu0 %v225
    %239 = vmatprep.subr.bf16.mxu0 0
    %240 = vmatpush1.bf16.msra.mxu0 %v226
    %241 = vmatprep.subr.bf16.mxu0 0
    %242 = vmatpush1.bf16.msra.mxu0 0
    %243 = vmatprep.subr.bf16.mxu0 0
    %244 = vmatpush1.bf16.msra.mxu0 0
    %245 = vmatprep.subr.bf16.mxu0 0
    %246 = vmatpush1.bf16.msra.mxu0 0
    %247 = vmatprep.subr.bf16.mxu0 0
    %248 = vmatpush1.bf16.msra.mxu0 0
    %249 = vmatprep.subr.bf16.mxu0 0
    %250 = vmatpush1.bf16.msra.mxu0 0
    %251 = vmatprep.subr.bf16.mxu0 0
    %252 = vmatpush1.bf16.msra.mxu0 0
    %253 = vmatprep.subr.bf16.mxu0 0
    %254 = vmatpush1.bf16.msra.mxu0 0
    %255 = vmatprep.subr.bf16.mxu0 0
    %256 = vmatpush1.bf16.msra.mxu0 0
    %257 = vmatprep.subr.bf16.mxu0 0
    %258 = vmatpush1.bf16.msra.mxu0 0
    %259 = vmatprep.subr.bf16.mxu0 0
    %260 = vmatpush1.bf16.msra.mxu0 0
    %261 = vmatprep.subr.bf16.mxu0 0
    %262 = vmatpush1.bf16.msra.mxu0 0
    %263 = vmatprep.subr.bf16.mxu0 0
    %264 = vmatpush1.bf16.msra.mxu0 0
    %265 = vmatprep.subr.bf16.mxu0 0
    %266 = vmatpush1.bf16.msra.mxu0 0
    %267 = vmatprep.subr.bf16.mxu0 0
    %268 = vmatpush1.bf16.msra.mxu0 0
    %269 = vmatprep.mubr.bf16.mxu0 0
    %270 = vmatmul.mubr.bf16.gmra.mrb[0].mxu0 %v235
    %v271 = vpop.f32.mrb[0].mxu0
    %v272 = vadd.f32 %v232, %v271
    %v273 = vpop.f32.mrb[0].mxu0
    %v274 = vpop.f32.mrb[0].mxu0
    %v275 = vpop.f32.mrb[0].mxu0
    %276 = vdwg.mxu0
    %vm277 = vcmask 1041408
    %v278 = vsel %vm277, %v272, -inf
    %279 = vmax.xlane.f32.xlu0 %v278
    %v280 = vpop.xlane.xlu0 %279
    %v281 = vsub.f32 %v272, %v280
    %v282 = vmul.f32 %v281, 1.442695
    %v283 = vpow.pop %v282
    %v284 = vsel %vm277, %v283, 0.0
    %285 = vadd.xlane.f32.xlu0 %v284
    %v286 = vpop.xlane.xlu0 %285
    %v287 = vlog2.pop %v286
    %v288 = vmul.f32 %v287, 0.6931472
    %v289 = vadd.f32 %v288, %v280
    %v290 = vsub.f32 %v272, %v289
    %291 = vst [vmem:[#allocation4] sm:$0x3] %v290
    %v292 = vld [vmem:[%s7] sm:$0xf]
    %v293 = vld [vmem:[%s7 + $0x4] sm:$0xf]
    %v294 = vld [vmem:[%s7 + $0x8] sm:$0xf]
    %v295 = vld [vmem:[%s7 + $0xc] sm:$0xf]
    %v300 = vunpack.c.l.b16 %v292
    %v301 = vunpack.c.l.b16 %v293
    %v302 = vunpack.c.l.b16 %v294
    %v303 = vunpack.c.l.b16 %v295
    %v304 = vpack.c.b16 %v301, %v300
    %v305 = vpack.c.b16 %v303, %v302
    %308 = vmatprep.subr.bf16.mxu0 0
    %309 = vmatpush1.bf16.msra.mxu0 %v304
    %310 = vmatprep.subr.bf16.mxu0 0
    %311 = vmatpush1.bf16.msra.mxu0 %v305
    %312 = vmatprep.subr.bf16.mxu0 0
    %313 = vmatpush1.bf16.msra.mxu0 0
    %314 = vmatprep.subr.bf16.mxu0 0
    %315 = vmatpush1.bf16.msra.mxu0 0
    %316 = vmatprep.subr.bf16.mxu0 0
    %317 = vmatpush1.bf16.msra.mxu0 0
    %318 = vmatprep.subr.bf16.mxu0 0
    %319 = vmatpush1.bf16.msra.mxu0 0
    %320 = vmatprep.subr.bf16.mxu0 0
    %321 = vmatpush1.bf16.msra.mxu0 0
    %322 = vmatprep.subr.bf16.mxu0 0
    %323 = vmatpush1.bf16.msra.mxu0 0
    %324 = vmatprep.subr.bf16.mxu0 0
    %325 = vmatpush1.bf16.msra.mxu0 0
    %326 = vmatprep.subr.bf16.mxu0 0
    %327 = vmatpush1.bf16.msra.mxu0 0
    %328 = vmatprep.subr.bf16.mxu0 0
    %329 = vmatpush1.bf16.msra.mxu0 0
    %330 = vmatprep.subr.bf16.mxu0 0
    %331 = vmatpush1.bf16.msra.mxu0 0
    %332 = vmatprep.subr.bf16.mxu0 0
    %333 = vmatpush1.bf16.msra.mxu0 0
    %334 = vmatprep.subr.bf16.mxu0 0
    %335 = vmatpush1.bf16.msra.mxu0 0
    %336 = vmatprep.subr.bf16.mxu0 0
    %337 = vmatpush1.bf16.msra.mxu0 0
    %338 = vmatprep.subr.bf16.mxu0 0
    %339 = vmatpush1.bf16.msra.mxu0 0
    %340 = vmatprep.mubr.bf16.mxu0 0
    %341 = vmatmul.mubr.bf16.gmra.mrb[0].mxu0 %v80
    %v342 = vpop.f32.mrb[0].mxu0
    %v343 = vadd.f32 0.0, %v342
    %v344 = vpop.f32.mrb[0].mxu0
    %v345 = vpop.f32.mrb[0].mxu0
    %v346 = vadd.f32 0.0, %v345
    %v347 = vpop.f32.mrb[0].mxu0
    %348 = vmatprep.mubr.bf16.mxu0 0
    %349 = vmatmul.mubr.bf16.gmra.mrb[0].mxu0 %v83
    %v350 = vpop.f32.mrb[0].mxu0
    %v351 = vadd.f32 0.0, %v350
    %v352 = vpop.f32.mrb[0].mxu0
    %v353 = vpop.f32.mrb[0].mxu0
    %v354 = vadd.f32 0.0, %v353
    %v355 = vpop.f32.mrb[0].mxu0
    %356 = vdwg.mxu0
    %v357 = vld [vmem:[#allocation2] sm:$0x1]
    %v359 = vlaneseq
    %v360 = vshrl.u32 %v359, 7
    %v361 = vsub.s32 0, %v360
    %v362 = vrot.slane %v357, %v361
    %v364 = vmul.f32 %v343, %v362
    %v365 = vmul.f32 %v346, %v362
    %v366 = vmul.f32 %v351, %v362
    %v367 = vmul.f32 %v354, %v362
    %v368 = vld [vmem:[#allocation3] sm:$0x1]
    %v370 = vlaneseq
    %v371 = vshrl.u32 %v370, 7
    %v372 = vsub.s32 0, %v371
    %v373 = vrot.slane %v368, %v372
    %v375 = vadd.f32 %v364, %v373
    %v376 = vadd.f32 %v365, %v373
    %v377 = vadd.f32 %v366, %v373
    %v378 = vadd.f32 %v367, %v373
    %v379 = vmax.f32 %v375, 0.0
    %v380 = vmax.f32 %v376, 0.0
    %v381 = vmax.f32 %v377, 0.0
    %v382 = vmax.f32 %v378, 0.0
    %v383 = vld [vmem:[%s10] sm:$0xf]
    %v384 = vld [vmem:[%s10 + $0x4] sm:$0xf]
    %v385 = vld [vmem:[%s10 + $0x8] sm:$0xf]
    %v386 = vld [vmem:[%s10 + $0xc] sm:$0xf]
    %v387 = vunpack.c.l.bf16 %v383
    %v388 = vunpack.c.l.bf16 %v384
    %v389 = vunpack.c.l.bf16 %v385
    %v390 = vunpack.c.l.bf16 %v386
    %392 = vset.pattern.permute.xlu0 0
    %393 = vperm.xlu0 %392, %v379
    %v394 = vpop.permute.xlu0 %393
    %397 = vset.pattern.permute.xlu0 0
    %398 = vperm.xlu0 %397, %v380
    %v399 = vpop.permute.xlu0 %398
    %402 = vset.pattern.permute.xlu0 0
    %403 = vperm.xlu0 %402, %v381
    %v404 = vpop.permute.xlu0 %403
    %407 = vset.pattern.permute.xlu0 0
    %408 = vperm.xlu0 %407, %v382
    %v409 = vpop.permute.xlu0 %408
    %v411 = vmul.f32 %v394, %v387
    %v412 = vmul.f32 %v399, %v388
    %v413 = vmul.f32 %v404, %v389
    %v414 = vmul.f32 %v409, %v390
    %v415 = vpack.c.bf16 %v412, %v411
    %v416 = vpack.c.bf16 %v414, %v413
    %v417 = vld [vmem:[%s11] sm:$0x1]
    %v419 = vlaneseq
    %v420 = vshrl.u32 %v419, 7
    %v421 = vsub.s32 0, %v420
    %v422 = vrot.slane %v417, %v421
    %424 = vmatprep.subr.bf16.mxu0 0
    %425 = vmatpush1.bf16.msra.mxu0 %v415
    %426 = vmatprep.subr.bf16.mxu0 0
    %427 = vmatpush1.bf16.msra.mxu0 %v416
    %428 = vmatprep.subr.bf16.mxu0 0
    %429 = vmatpush1.bf16.msra.mxu0 0
    %430 = vmatprep.subr.bf16.mxu0 0
    %431 = vmatpush1.bf16.msra.mxu0 0
    %432 = vmatprep.subr.bf16.mxu0 0
    %433 = vmatpush1.bf16.msra.mxu0 0
    %434 = vmatprep.subr.bf16.mxu0 0
    %435 = vmatpush1.bf16.msra.mxu0 0
    %436 = vmatprep.subr.bf16.mxu0 0
    %437 = vmatpush1.bf16.msra.mxu0 0
    %438 = vmatprep.subr.bf16.mxu0 0
    %439 = vmatpush1.bf16.msra.mxu0 0
    %440 = vmatprep.subr.bf16.mxu0 0
    %441 = vmatpush1.bf16.msra.mxu0 0
    %442 = vmatprep.subr.bf16.mxu0 0
    %443 = vmatpush1.bf16.msra.mxu0 0
    %444 = vmatprep.subr.bf16.mxu0 0
    %445 = vmatpush1.bf16.msra.mxu0 0
    %446 = vmatprep.subr.bf16.mxu0 0
    %447 = vmatpush1.bf16.msra.mxu0 0
    %448 = vmatprep.subr.bf16.mxu0 0
    %449 = vmatpush1.bf16.msra.mxu0 0
    %450 = vmatprep.subr.bf16.mxu0 0
    %451 = vmatpush1.bf16.msra.mxu0 0
    %452 = vmatprep.subr.bf16.mxu0 0
    %453 = vmatpush1.bf16.msra.mxu0 0
    %454 = vmatprep.subr.bf16.mxu0 0
    %455 = vmatpush1.bf16.msra.mxu0 0
    %456 = vmatprep.mubr.bf16.mxu0 0
    %457 = vmatmul.mubr.bf16.gmra.mrb[0].mxu0 %v235
    %v458 = vpop.f32.mrb[0].mxu0
    %v459 = vadd.f32 %v422, %v458
    %v460 = vpop.f32.mrb[0].mxu0
    %v461 = vpop.f32.mrb[0].mxu0
    %v462 = vpop.f32.mrb[0].mxu0
    %463 = vdwg.mxu0
    %v464 = vmax.f32 %v459, 0.0
    %v465 = vpack.c.bf16 %v464, %v464
    %v466 = vld [vmem:[%s12] sm:$0xf]
    %v467 = vld [vmem:[%s12 + $0x4] sm:$0xf]
    %v468 = vld [vmem:[%s12 + $0x8] sm:$0xf]
    %v469 = vld [vmem:[%s12 + $0xc] sm:$0xf]
    %v470 = vld [vmem:[%s13] sm:$0x1]
    %v472 = vlaneseq
    %v473 = vshrl.u32 %v472, 7
    %v474 = vsub.s32 0, %v473
    %v475 = vrot.slane %v470, %v474
    %v481 = vunpack.c.l.b16 %v466
    %v482 = vunpack.c.l.b16 %v467
    %v483 = vunpack.c.l.b16 %v468
    %v484 = vunpack.c.l.b16 %v469
    %v485 = vpack.c.b16 %v482, %v481
    %v486 = vpack.c.b16 %v484, %v483
    %v490 = vsel %vm78, %v465, 0
    %492 = vmatprep.subr.bf16.mxu0 0
    %493 = vmatpush1.bf16.msra.mxu0 %v485
    %494 = vmatprep.subr.bf16.mxu0 0
    %495 = vmatpush1.bf16.msra.mxu0 %v486
    %496 = vmatprep.subr.bf16.mxu0 0
    %497 = vmatpush1.bf16.msra.mxu0 0
    %498 = vmatprep.subr.bf16.mxu0 0
    %499 = vmatpush1.bf16.msra.mxu0 0
    %500 = vmatprep.subr.bf16.mxu0 0
    %501 = vmatpush1.bf16.msra.mxu0 0
    %502 = vmatprep.subr.bf16.mxu0 0
    %503 = vmatpush1.bf16.msra.mxu0 0
    %504 = vmatprep.subr.bf16.mxu0 0
    %505 = vmatpush1.bf16.msra.mxu0 0
    %506 = vmatprep.subr.bf16.mxu0 0
    %507 = vmatpush1.bf16.msra.mxu0 0
    %508 = vmatprep.subr.bf16.mxu0 0
    %509 = vmatpush1.bf16.msra.mxu0 0
    %510 = vmatprep.subr.bf16.mxu0 0
    %511 = vmatpush1.bf16.msra.mxu0 0
    %512 = vmatprep.subr.bf16.mxu0 0
    %513 = vmatpush1.bf16.msra.mxu0 0
    %514 = vmatprep.subr.bf16.mxu0 0
    %515 = vmatpush1.bf16.msra.mxu0 0
    %516 = vmatprep.subr.bf16.mxu0 0
    %517 = vmatpush1.bf16.msra.mxu0 0
    %518 = vmatprep.subr.bf16.mxu0 0
    %519 = vmatpush1.bf16.msra.mxu0 0
    %520 = vmatprep.subr.bf16.mxu0 0
    %521 = vmatpush1.bf16.msra.mxu0 0
    %522 = vmatprep.subr.bf16.mxu0 0
    %523 = vmatpush1.bf16.msra.mxu0 0
    %524 = vmatprep.mubr.bf16.mxu0 0
    %525 = vmatmul.mubr.bf16.gmra.mrb[0].mxu0 %v490
    %v526 = vpop.f32.mrb[0].mxu0
    %v527 = vadd.f32 %v475, %v526
    %v528 = vpop.f32.mrb[0].mxu0
    %v529 = vpop.f32.mrb[0].mxu0
    %v530 = vpop.f32.mrb[0].mxu0
    %531 = vdwg.mxu0
    %v532 = vtanh.pop %v527
    %533 = vst [vmem:[%s15] sm:$0x3] %v532
    // Predicated region
    $region58: #{network_forward.3} parent=1 // pred_check
      _
    $region59: #{network_forward.3} parent=1 // pred_check_branch
      %535 = sbr.rel (0) target = $region61
    $region60: #{network_forward.3} parent=1 // pred_region
      %s537 = ssub.s32 32, 32
      %538 = vsyncadd [#allocation5], %s537
      %s540 = sshll.u32 [#allocation4], 4
      %s541 = int_to_ptr.vmem [resolvable:$true] %s540
      %543 = dma.vmem_to_hbm [thread:$0]  %s541, 32, %s14, [#allocation5]
    $region61: #{network_forward.3} parent=1 // pred_fallthru
      _
    // Predicated region
    $region62: #{network_forward.3} parent=1 // pred_check
      _
    $region63: #{network_forward.3} parent=1 // pred_check_branch
      %545 = sbr.rel (0) target = $region65
    $region64: #{network_forward.3} parent=1 // pred_region
      _
    $region65: #{network_forward.3} parent=1 // pred_fallthru
      _
    // Predicated region
    $region66: #{network_forward.3} parent=1 // pred_check
      _
    $region67: #{network_forward.3} parent=1 // pred_check_branch
      %547 = sbr.rel (0) target = $region69
    $region68: #{network_forward.3} parent=1 // pred_region
      %548 = dma.done [#allocation5], 32
    $region69: #{network_forward.3} parent=1 // pred_fallthru
      _
    // Predicated region
    $region70: #{network_forward.3} parent=1 // pred_check
      _
    $region71: #{network_forward.3} parent=1 // pred_check_branch
      %550 = sbr.rel (0) target = $region73
    $region72: #{network_forward.3} parent=1 // pred_region
      _
    $region73: #{network_forward.3} parent=1 // pred_fallthru
      _
    %551 = vsyncpa [#allocation5], 1

// kernel: network_forward.2
$region0: #{network_forward.2}
  #allocation0 [shape = 'u32[]', space=smem, size = 0x4, offset = 0x4, fixed_abs, tag = 'smem constant byte address 0x4 - core index']
  #allocation1 [shape = 'u32[144,128]{1,0:T(1,128)}', space=vmem, size = 0x12000, scoped, tag = 'internal scratch']
  #allocation2 [shape = 'f32[32,32]{1,0:T(8,128)}', space=vmem, size = 0x4000, scoped, tag = 'scratch operand']
  #allocation3 [shape = 'f32[32,32]{1,0:T(8,128)}', space=vmem, size = 0x4000, scoped, tag = 'scratch operand']
  %s0 = inlined_call_operand.vmem [shape: f32[32,32], index: 0, kind: input, shape index: {}]
  %s1 = inlined_call_operand.vmem [shape: bf16[9,32,32], index: 1, kind: input, shape index: {}]
  %s2 = inlined_call_operand.hbm [shape: bf16[5,9,32,32], index: 2, kind: input, shape index: {}]
  %s3 = inlined_call_operand.vmem [shape: f32[5,1,32], index: 3, kind: input, shape index: {}]
  %s4 = inlined_call_operand.vmem [shape: f32[5,1,32], index: 4, kind: input, shape index: {}]
  %s5 = inlined_call_operand.vmem [shape: f32[32,32], index: 5, kind: output, shape index: {}]
  %s6 = sld [smem:[#allocation0]]
  $region69: #{network_forward.2} parent=0
    _
  %s8 = ssub.s32 1, %s6
  %s9 = scalar_select 0, %s8, %s6
  $region1: #{network_forward.2} parent=0
    #allocation4 [shape = 'u8[147456]{0}', space=vmem, size = 0x24000, scoped, tag = 'input window, operand 2']
    #allocation5 [shape = 's32[2]{0}', space=sflag, size = 0x8, scoped, tag = 'scoped memory for network_forward.2']
    %10 = vsyncpa [#allocation5], 0
    %s11 = scalar_lea.sflag [#allocation5], 1
    %12 = vsyncpa %s11, 0
    loop: start=0, step=1, limit=7
    $region2: #{network_forward.2} parent=1 // loop_pre_header
      _
    $region3: #{network_forward.2} parent=1 // loop_header
      %s14 = sphi 0, %s18
      %p15 = scmp.ge.s32.totalorder %s14, 7
      %s22 = sphi 0, %s22
      %s24 = sphi 0, %s22
      %s25 = sphi 0, %s24
      %s39 = sphi 0, %s25
      %s43 = sphi 0, %s43
      %s45 = sphi 0, %s43
      %s46 = sphi 0, %s45
      %s60 = sphi 0, %s46
      %s66 = sphi 0, %s68
      %s69 = sphi 0, %s66
      %s70 = sphi 0, %s69
      %s86 = sphi 0, %s70
      %s92 = sphi 0, %s94
      %s95 = sphi 0, %s92
      %s96 = sphi 0, %s95
      %s112 = sphi 0, %s96
      %s118 = sphi 0, %s120
      %s121 = sphi 0, %s118
      %s122 = sphi 0, %s121
      %s138 = sphi 0, %s122
      %s142 = sphi 0, %s142
      %s144 = sphi 0, %s142
      %s145 = sphi 0, %s144
      %s159 = sphi 0, %s145
    $region4: #{network_forward.2} parent=1 // loop_header_branch
      %17 = sbr.rel (%p15) target = $region8
    $region5: #{network_forward.2} parent=1 // loop_body
      %s19 = ssub.s32 %s14, 1
      %s20 = ssub.s32 %s14, 2
      %s21 = sadd.s32 %s14, 1
      %s23 = sadd.s32 %s22, 1
      %p26 = scmp.eq.s32.totalorder %s14, 4
      %p27 = scmp.ne.s32.totalorder %s22, %s24
      %p28 = scmp.eq.s32.totalorder %s14, 0
      %p29 = por %p27, %p28
      %p30 = scmp.ne.s32.totalorder %s22, %s24
      %p31 = scmp.eq.s32.totalorder %s19, 4
      %p32 = por %p30, %p31
      %p33 = scmp.ne.s32.totalorder %s24, %s25
      %p34 = scmp.eq.s32.totalorder %s19, 0
      %p35 = por %p33, %p34
      %p36 = scmp.ne.s32.totalorder %s24, %s25
      %p37 = scmp.eq.s32.totalorder %s20, 4
      %p38 = por %p36, %p37
      %p40 = scmp.ne.s32.totalorder %s25, %s39
      %p41 = scmp.eq.s32.totalorder %s20, 0
      %p42 = por %p40, %p41
      %s44 = sadd.s32 %s43, 1
      %p47 = scmp.eq.s32.totalorder %s14, 4
      %p48 = scmp.ne.s32.totalorder %s43, %s45
      %p49 = scmp.eq.s32.totalorder %s14, 0
      %p50 = por %p48, %p49
      %p51 = scmp.ne.s32.totalorder %s43, %s45
      %p52 = scmp.eq.s32.totalorder %s19, 4
      %p53 = por %p51, %p52
      %p54 = scmp.ne.s32.totalorder %s45, %s46
      %p55 = scmp.eq.s32.totalorder %s19, 0
      %p56 = por %p54, %p55
      %p57 = scmp.ne.s32.totalorder %s45, %s46
      %p58 = scmp.eq.s32.totalorder %s20, 4
      %p59 = por %p57, %p58
      %p61 = scmp.ne.s32.totalorder %s46, %s60
      %p62 = scmp.eq.s32.totalorder %s20, 0
      %p63 = por %p61, %p62
      %s64 = ssub.s32 %s14, %s21
      %p65 = scmp.eq.s32.totalorder %s64, 0
      %s67 = sadd.s32 %s66, 1
      %s68 = scalar_select %p65, %s66, %s67
      %p71 = pneg %p65
      %p72 = scmp.eq.s32.totalorder %s14, 4
      %p73 = por %p71, %p72
      %p74 = scmp.ne.s32.totalorder %s66, %s69
      %p75 = scmp.eq.s32.totalorder %s14, 0
      %p76 = por %p74, %p75
      %p77 = scmp.ne.s32.totalorder %s66, %s69
      %p78 = scmp.eq.s32.totalorder %s19, 4
      %p79 = por %p77, %p78
      %p80 = scmp.ne.s32.totalorder %s69, %s70
      %p81 = scmp.eq.s32.totalorder %s19, 0
      %p82 = por %p80, %p81
      %p83 = scmp.ne.s32.totalorder %s69, %s70
      %p84 = scmp.eq.s32.totalorder %s20, 4
      %p85 = por %p83, %p84
      %p87 = scmp.ne.s32.totalorder %s70, %s86
      %p88 = scmp.eq.s32.totalorder %s20, 0
      %p89 = por %p87, %p88
      %s90 = ssub.s32 %s14, %s21
      %p91 = scmp.eq.s32.totalorder %s90, 0
      %s93 = sadd.s32 %s92, 1
      %s94 = scalar_select %p91, %s92, %s93
      %p97 = pneg %p91
      %p98 = scmp.eq.s32.totalorder %s14, 4
      %p99 = por %p97, %p98
      %p100 = scmp.ne.s32.totalorder %s92, %s95
      %p101 = scmp.eq.s32.totalorder %s14, 0
      %p102 = por %p100, %p101
      %p103 = scmp.ne.s32.totalorder %s92, %s95
      %p104 = scmp.eq.s32.totalorder %s19, 4
      %p105 = por %p103, %p104
      %p106 = scmp.ne.s32.totalorder %s95, %s96
      %p107 = scmp.eq.s32.totalorder %s19, 0
      %p108 = por %p106, %p107
      %p109 = scmp.ne.s32.totalorder %s95, %s96
      %p110 = scmp.eq.s32.totalorder %s20, 4
      %p111 = por %p109, %p110
      %p113 = scmp.ne.s32.totalorder %s96, %s112
      %p114 = scmp.eq.s32.totalorder %s20, 0
      %p115 = por %p113, %p114
      %s116 = ssub.s32 %s14, %s21
      %p117 = scmp.eq.s32.totalorder %s116, 0
      %s119 = sadd.s32 %s118, 1
      %s120 = scalar_select %p117, %s118, %s119
      %p123 = pneg %p117
      %p124 = scmp.eq.s32.totalorder %s14, 4
      %p125 = por %p123, %p124
      %p126 = scmp.ne.s32.totalorder %s118, %s121
      %p127 = scmp.eq.s32.totalorder %s14, 0
      %p128 = por %p126, %p127
      %p129 = scmp.ne.s32.totalorder %s118, %s121
      %p130 = scmp.eq.s32.totalorder %s19, 4
      %p131 = por %p129, %p130
      %p132 = scmp.ne.s32.totalorder %s121, %s122
      %p133 = scmp.eq.s32.totalorder %s19, 0
      %p134 = por %p132, %p133
      %p135 = scmp.ne.s32.totalorder %s121, %s122
      %p136 = scmp.eq.s32.totalorder %s20, 4
      %p137 = por %p135, %p136
      %p139 = scmp.ne.s32.totalorder %s122, %s138
      %p140 = scmp.eq.s32.totalorder %s20, 0
      %p141 = por %p139, %p140
      %s143 = sadd.s32 %s142, 1
      %p146 = scmp.eq.s32.totalorder %s14, 4
      %p147 = scmp.ne.s32.totalorder %s142, %s144
      %p148 = scmp.eq.s32.totalorder %s14, 0
      %p149 = por %p147, %p148
      %p150 = scmp.ne.s32.totalorder %s142, %s144
      %p151 = scmp.eq.s32.totalorder %s19, 4
      %p152 = por %p150, %p151
      %p153 = scmp.ne.s32.totalorder %s144, %s145
      %p154 = scmp.eq.s32.totalorder %s19, 0
      %p155 = por %p153, %p154
      %p156 = scmp.ne.s32.totalorder %s144, %s145
      %p157 = scmp.eq.s32.totalorder %s20, 4
      %p158 = por %p156, %p157
      %p160 = scmp.ne.s32.totalorder %s145, %s159
      %p161 = scmp.eq.s32.totalorder %s20, 0
      %p162 = por %p160, %p161
      %p163 = scmp.le.s32.totalorder 1, %s14
      %p164 = scmp.lt.s32.totalorder %s14, 6
      %p165 = pnand %p163, %p164
      %p166 = pneg %p165
      // Predicated region
      $region9: #{network_forward.2} parent=5 // pred_check
        _
      $region10: #{network_forward.2} parent=5 // pred_check_branch
        %168 = sbr.rel (%p165) target = $region12
      $region11: #{network_forward.2} parent=5 // pred_region
        %s169 = ssub.s32 %s14, 1
        // Predicated region
        $region13: #{network_forward.2} parent=11 // pred_check
          %p170 = pneg %p35
        $region14: #{network_forward.2} parent=11 // pred_check_branch
          %172 = sbr.rel (%p170) target = $region16
        $region15: #{network_forward.2} parent=11 // pred_region
          _
        $region16: #{network_forward.2} parent=11 // pred_fallthru
          _
        // Predicated region
        $region17: #{network_forward.2} parent=11 // pred_check
          %p173 = pneg %p56
        $region18: #{network_forward.2} parent=11 // pred_check_branch
          %175 = sbr.rel (%p173) target = $region20
        $region19: #{network_forward.2} parent=11 // pred_region
          _
        $region20: #{network_forward.2} parent=11 // pred_fallthru
          _
      $region12: #{network_forward.2} parent=5 // pred_fallthru
        _
      %p176 = scmp.lt.s32.totalorder %s14, 5
      // Predicated region
      $region21: #{network_forward.2} parent=5 // pred_check
        %p177 = pneg %p176
      $region22: #{network_forward.2} parent=5 // pred_check_branch
        %179 = sbr.rel (%p177) target = $region24
      $region23: #{network_forward.2} parent=5 // pred_region
        // Predicated region
        $region25: #{network_forward.2} parent=23 // pred_check
          %p180 = pneg %p76
        $region26: #{network_forward.2} parent=23 // pred_check_branch
          %182 = sbr.rel (%p180) target = $region28
        $region27: #{network_forward.2} parent=23 // pred_region
          %s183 = sand.u32 %s66, 1
          %s184 = scalar_lea.sflag [#allocation5], %s183
          %s185 = sand.u32 %s66, 1
          %s186 = smul.addr %s185, 144
          %s187 = scalar_lea.vmem [#allocation4], %s186
          %s189 = ssub.s32 2304, 2304
          %190 = vsyncadd %s184, %s189
          %s191 = smul.addr %s14, 36
          %s192 = smul.addr %s191, 64
          %s193 = scalar_lea.hbm %s2, %s192
          %s194 = sshll.u32 %s187, 4
          %s195 = int_to_ptr.vmem [resolvable:$true] %s194
          %200 = dma.hbm_to_vmem [thread:$0]  %s193, 2304, %s195, %s184, 64, 64, 4
        $region28: #{network_forward.2} parent=23 // pred_fallthru
          _
        // Predicated region
        $region29: #{network_forward.2} parent=23 // pred_check
          %p201 = pneg %p102
        $region30: #{network_forward.2} parent=23 // pred_check_branch
          %203 = sbr.rel (%p201) target = $region32
        $region31: #{network_forward.2} parent=23 // pred_region
          %p204 = scmp.lt.s32.totalorder %s14, 4
          %s205 = scalar_select %p204, %s14, 4
          %s206 = scalar_lea.vmem %s3, %s205
        $region32: #{network_forward.2} parent=23 // pred_fallthru
          _
        // Predicated region
        $region33: #{network_forward.2} parent=23 // pred_check
          %p207 = pneg %p128
        $region34: #{network_forward.2} parent=23 // pred_check_branch
          %209 = sbr.rel (%p207) target = $region36
        $region35: #{network_forward.2} parent=23 // pred_region
          %p210 = scmp.lt.s32.totalorder %s14, 4
          %s211 = scalar_select %p210, %s14, 4
          %s212 = scalar_lea.vmem %s4, %s211
        $region36: #{network_forward.2} parent=23 // pred_fallthru
          _
      $region24: #{network_forward.2} parent=5 // pred_fallthru
        _
      %p213 = scmp.le.s32.totalorder 1, %s14
      %p214 = scmp.lt.s32.totalorder %s14, 6
      %p215 = pnand %p213, %p214
      %p216 = pneg %p215
      // Predicated region
      $region37: #{network_forward.2} parent=5 // pred_check
        _
      $region38: #{network_forward.2} parent=5 // pred_check_branch
        %218 = sbr.rel (%p215) target = $region40
      $region39: #{network_forward.2} parent=5 // pred_region
        %s219 = ssub.s32 %s14, 1
        %s220 = sand.u32 %s69, 1
        %s221 = scalar_lea.sflag [#allocation5], %s220
        %s222 = sand.u32 %s69, 1
        %s223 = smul.addr %s222, 144
        %s224 = scalar_lea.vmem [#allocation4], %s223
        // Predicated region
        $region41: #{network_forward.2} parent=39 // pred_check
          %p225 = pneg %p82
        $region42: #{network_forward.2} parent=39 // pred_check_branch
          %227 = sbr.rel (%p225) target = $region44
        $region43: #{network_forward.2} parent=39 // pred_region
          %228 = dma.done %s221, 2304
        $region44: #{network_forward.2} parent=39 // pred_fallthru
          _
        %p229 = pneg %p35
        %p230 = pneg %p32
        %p231 = pneg %p56
        %p232 = pneg %p53
        %s233 = sand.u32 %s69, 1
        %s234 = scalar_lea.sflag [#allocation5], %s233
        %s235 = sand.u32 %s69, 1
        %s236 = smul.addr %s235, 144
        %s237 = scalar_lea.vmem [#allocation4], %s236
        %p238 = pneg %p82
        %p239 = pneg %p79
        %p240 = scmp.lt.s32.totalorder %s19, 4
        %s241 = scalar_select %p240, %s19, 4
        %s242 = scalar_lea.vmem %s3, %s241
        %p243 = pneg %p108
        %p244 = pneg %p105
        %p245 = scmp.lt.s32.totalorder %s19, 4
        %s246 = scalar_select %p245, %s19, 4
        %s247 = scalar_lea.vmem %s4, %s246
        %p248 = pneg %p134
        %p249 = pneg %p131
        %p250 = pneg %p155
        %p251 = pneg %p152
        %p252 = scmp.lt.s32.totalorder %s19, 4
        %s253 = scalar_select %p252, %s19, 4
        %s254 = scalar_lea.vmem %s3, %s253
        %p255 = scmp.lt.s32.totalorder %s19, 4
        %s256 = scalar_select %p255, %s19, 4
        %s257 = scalar_lea.vmem %s4, %s256
        %p259 = scmp.eq.s32.totalorder %s19, 0
        // Predicated region
        $region45: #{network_forward.2} parent=39 // pred_check
          %p260 = pneg %p259
        $region46: #{network_forward.2} parent=39 // pred_check_branch
          %262 = sbr.rel (%p260) target = $region48
        $region47: #{network_forward.2} parent=39 // pred_region
          %v263 = vld [vmem:[%s0] sm:$0xff]
          %v264 = vld [vmem:[%s0 + $0x8] sm:$0xff]
          %v265 = vld [vmem:[%s0 + $0x10] sm:$0xff]
          %v266 = vld [vmem:[%s0 + $0x18] sm:$0xff]
          %vm267 = vcmask 261120
          %268 = vst.msk [vmem:[#allocation2] sm:$0xff] %vm267, %v263
          %269 = vst.msk [vmem:[#allocation2 + $0x8] sm:$0xff] %vm267, %v264
          %270 = vst.msk [vmem:[#allocation2 + $0x10] sm:$0xff] %vm267, %v265
          %271 = vst.msk [vmem:[#allocation2 + $0x18] sm:$0xff] %vm267, %v266
          %v272 = vld [vmem:[%s0] sm:$0xff]
          %v273 = vld [vmem:[%s0 + $0x8] sm:$0xff]
          %v274 = vld [vmem:[%s0 + $0x10] sm:$0xff]
          %v275 = vld [vmem:[%s0 + $0x18] sm:$0xff]
          %276 = vst.msk [vmem:[#allocation3] sm:$0xff] %vm267, %v272
          %277 = vst.msk [vmem:[#allocation3 + $0x8] sm:$0xff] %vm267, %v273
          %278 = vst.msk [vmem:[#allocation3 + $0x10] sm:$0xff] %vm267, %v274
          %279 = vst.msk [vmem:[#allocation3 + $0x18] sm:$0xff] %vm267, %v275
        $region48: #{network_forward.2} parent=39 // pred_fallthru
          _
        %p280 = scmp.lt.s32.totalorder %s19, 0
        %s281 = ssub.s32 0, %s19
        %s282 = scalar_select %p280, %s281, %s19
        %s283 = sand.u32 %s282, 1
        %s284 = ssub.s32 0, %s283
        %s285 = scalar_select %p280, %s284, %s283
        %p286 = scmp.ne.s32.totalorder %s285, 0
        %p287 = scmp.lt.s32.totalorder %s285, 0
        %p288 = pnand %p287, %p286
        %p289 = pneg %p288
        %s290 = sadd.s32 %s285, 2
        %s291 = scalar_select %p289, %s290, %s285
        %p292 = scmp.eq.s32.totalorder %s291, 1
        // Predicated region
        $region49: #{network_forward.2} parent=39 // pred_check
          %p293 = pneg %p292
        $region50: #{network_forward.2} parent=39 // pred_check_branch
          %295 = sbr.rel (%p293) target = $region52
        $region51: #{network_forward.2} parent=39 // pred_region
          %v296 = vld [vmem:[#allocation2] sm:$0xff]
          %v297 = vld [vmem:[#allocation2 + $0x8] sm:$0xff]
          %v298 = vld [vmem:[#allocation2 + $0x10] sm:$0xff]
          %v299 = vld [vmem:[#allocation2 + $0x18] sm:$0xff]
          %vm300 = vcmask 261120
          %301 = vst.msk [vmem:[#allocation3] sm:$0xff] %vm300, %v296
          %302 = vst.msk [vmem:[#allocation3 + $0x8] sm:$0xff] %vm300, %v297
          %303 = vst.msk [vmem:[#allocation3 + $0x10] sm:$0xff] %vm300, %v298
          %304 = vst.msk [vmem:[#allocation3 + $0x18] sm:$0xff] %vm300, %v299
        $region52: #{network_forward.2} parent=39 // pred_fallthru
          _
        %v305 = vld [vmem:[#allocation2] sm:$0xff]
        %v306 = vld [vmem:[#allocation2 + $0x8] sm:$0xff]
        %v307 = vld [vmem:[#allocation2 + $0x10] sm:$0xff]
        %v308 = vld [vmem:[#allocation2 + $0x18] sm:$0xff]
        %v309 = vpack.c.bf16 %v306, %v305
        %v310 = vpack.c.bf16 %v308, %v307
        %v311 = vld [vmem:[%s1] sm:$0xf]
        %v312 = vld [vmem:[%s1 + $0x4] sm:$0xf]
        %v313 = vld [vmem:[%s1 + $0x8] sm:$0xf]
        %v314 = vld [vmem:[%s1 + $0xc] sm:$0xf]
        %v319 = vunpack.c.l.b16 %v311
        %v320 = vunpack.c.l.b16 %v312
        %v321 = vunpack.c.l.b16 %v313
        %v322 = vunpack.c.l.b16 %v314
        %v323 = vpack.c.b16 %v320, %v319
        %v324 = vpack.c.b16 %v322, %v321
        %vm325 = vcmask 261120
        %v327 = vsel %vm325, %v323, 0
        %v330 = vsel %vm325, %v324, 0
        %332 = vmatprep.subr.bf16.mxu0 0
        %333 = vmatpush1.bf16.msra.mxu0 %v309
        %334 = vmatprep.subr.bf16.mxu0 0
        %335 = vmatpush1.bf16.msra.mxu0 %v310
        %336 = vmatprep.subr.bf16.mxu0 0
        %337 = vmatpush1.bf16.msra.mxu0 0
        %338 = vmatprep.subr.bf16.mxu0 0
        %339 = vmatpush1.bf16.msra.mxu0 0
        %340 = vmatprep.subr.bf16.mxu0 0
        %341 = vmatpush1.bf16.msra.mxu0 0
        %342 = vmatprep.subr.bf16.mxu0 0
        %343 = vmatpush1.bf16.msra.mxu0 0
        %344 = vmatprep.subr.bf16.mxu0 0
        %345 = vmatpush1.bf16.msra.mxu0 0
        %346 = vmatprep.subr.bf16.mxu0 0
        %347 = vmatpush1.bf16.msra.mxu0 0
        %348 = vmatprep.subr.bf16.mxu0 0
        %349 = vmatpush1.bf16.msra.mxu0 0
        %350 = vmatprep.subr.bf16.mxu0 0
        %351 = vmatpush1.bf16.msra.mxu0 0
        %352 = vmatprep.subr.bf16.mxu0 0
        %353 = vmatpush1.bf16.msra.mxu0 0
        %354 = vmatprep.subr.bf16.mxu0 0
        %355 = vmatpush1.bf16.msra.mxu0 0
        %356 = vmatprep.subr.bf16.mxu0 0
        %357 = vmatpush1.bf16.msra.mxu0 0
        %358 = vmatprep.subr.bf16.mxu0 0
        %359 = vmatpush1.bf16.msra.mxu0 0
        %360 = vmatprep.subr.bf16.mxu0 0
        %361 = vmatpush1.bf16.msra.mxu0 0
        %362 = vmatprep.subr.bf16.mxu0 0
        %363 = vmatpush1.bf16.msra.mxu0 0
        %364 = vmatprep.mubr.bf16.mxu0 0
        %365 = vmatmul.mubr.bf16.gmra.mrb[0].mxu0 %v327
        %v366 = vpop.f32.mrb[0].mxu0
        %v367 = vadd.f32 0.0, %v366
        %v368 = vpop.f32.mrb[0].mxu0
        %v369 = vpop.f32.mrb[0].mxu0
        %v370 = vadd.f32 0.0, %v369
        %v371 = vpop.f32.mrb[0].mxu0
        %372 = vmatprep.mubr.bf16.mxu0 0
        %373 = vmatmul.mubr.bf16.gmra.mrb[0].mxu0 %v330
        %v374 = vpop.f32.mrb[0].mxu0
        %v375 = vadd.f32 0.0, %v374
        %v376 = vpop.f32.mrb[0].mxu0
        %v377 = vpop.f32.mrb[0].mxu0
        %v378 = vadd.f32 0.0, %v377
        %v379 = vpop.f32.mrb[0].mxu0
        %380 = vdwg.mxu0
        %v381 = vpack.c.bf16 %v370, %v367
        %v382 = vpack.c.bf16 %v378, %v375
        %v383 = vld [vmem:[%s224] sm:$0xf]
        %v384 = vld [vmem:[%s224 + $0x4] sm:$0xf]
        %v385 = vld [vmem:[%s224 + $0x8] sm:$0xf]
        %v386 = vld [vmem:[%s224 + $0xc] sm:$0xf]
        %s387 = scalar_lea.vmem %s1, 16
        %v388 = vld [vmem:[%s387] sm:$0xf]
        %v389 = vld [vmem:[%s387 + $0x4] sm:$0xf]
        %v390 = vld [vmem:[%s387 + $0x8] sm:$0xf]
        %v391 = vld [vmem:[%s387 + $0xc] sm:$0xf]
        %v396 = vunpack.c.l.b16 %v388
        %v397 = vunpack.c.l.b16 %v389
        %v398 = vunpack.c.l.b16 %v390
        %v399 = vunpack.c.l.b16 %v391
        %v400 = vpack.c.b16 %v397, %v396
        %v401 = vpack.c.b16 %v399, %v398
        %v403 = vsel %vm325, %v400, 0
        %v406 = vsel %vm325, %v401, 0
        %408 = vmatprep.subr.bf16.mxu0 0
        %409 = vmatpush1.bf16.msra.mxu0 %v309
        %410 = vmatprep.subr.bf16.mxu0 0
        %411 = vmatpush1.bf16.msra.mxu0 %v310
        %412 = vmatprep.subr.bf16.mxu0 0
        %413 = vmatpush1.bf16.msra.mxu0 0
        %414 = vmatprep.subr.bf16.mxu0 0
        %415 = vmatpush1.bf16.msra.mxu0 0
        %416 = vmatprep.subr.bf16.mxu0 0
        %417 = vmatpush1.bf16.msra.mxu0 0
        %418 = vmatprep.subr.bf16.mxu0 0
        %419 = vmatpush1.bf16.msra.mxu0 0
        %420 = vmatprep.subr.bf16.mxu0 0
        %421 = vmatpush1.bf16.msra.mxu0 0
        %422 = vmatprep.subr.bf16.mxu0 0
        %423 = vmatpush1.bf16.msra.mxu0 0
        %424 = vmatprep.subr.bf16.mxu0 0
        %425 = vmatpush1.bf16.msra.mxu0 0
        %426 = vmatprep.subr.bf16.mxu0 0
        %427 = vmatpush1.bf16.msra.mxu0 0
        %428 = vmatprep.subr.bf16.mxu0 0
        %429 = vmatpush1.bf16.msra.mxu0 0
        %430 = vmatprep.subr.bf16.mxu0 0
        %431 = vmatpush1.bf16.msra.mxu0 0
        %432 = vmatprep.subr.bf16.mxu0 0
        %433 = vmatpush1.bf16.msra.mxu0 0
        %434 = vmatprep.subr.bf16.mxu0 0
        %435 = vmatpush1.bf16.msra.mxu0 0
        %436 = vmatprep.subr.bf16.mxu0 0
        %437 = vmatpush1.bf16.msra.mxu0 0
        %438 = vmatprep.subr.bf16.mxu0 0
        %439 = vmatpush1.bf16.msra.mxu0 0
        %440 = vmatprep.mubr.bf16.mxu0 0
        %441 = vmatmul.mubr.bf16.gmra.mrb[0].mxu0 %v403
        %v442 = vpop.f32.mrb[0].mxu0
        %v443 = vadd.f32 0.0, %v442
        %v444 = vpop.f32.mrb[0].mxu0
        %v445 = vpop.f32.mrb[0].mxu0
        %v446 = vadd.f32 0.0, %v445
        %v447 = vpop.f32.mrb[0].mxu0
        %448 = vmatprep.mubr.bf16.mxu0 0
        %449 = vmatmul.mubr.bf16.gmra.mrb[0].mxu0 %v406
        %v450 = vpop.f32.mrb[0].mxu0
        %v451 = vadd.f32 0.0, %v450
        %v452 = vpop.f32.mrb[0].mxu0
        %v453 = vpop.f32.mrb[0].mxu0
        %v454 = vadd.f32 0.0, %v453
        %v455 = vpop.f32.mrb[0].mxu0
        %456 = vdwg.mxu0
        %v457 = vpack.c.bf16 %v446, %v443
        %v458 = vpack.c.bf16 %v454, %v451
        %s459 = scalar_lea.vmem %s224, 16 [#allocation4]
        %v460 = vld [vmem:[%s459] sm:$0xf]
        %v461 = vld [vmem:[%s459 + $0x4] sm:$0xf]
        %v462 = vld [vmem:[%s459 + $0x8] sm:$0xf]
        %v463 = vld [vmem:[%s459 + $0xc] sm:$0xf]
        %v468 = vunpack.c.l.b16 %v460
        %v469 = vunpack.c.l.b16 %v461
        %v470 = vunpack.c.l.b16 %v462
        %v471 = vunpack.c.l.b16 %v463
        %v472 = vpack.c.b16 %v469, %v468
        %v473 = vpack.c.b16 %v471, %v470
        %v477 = vsel %vm325, %v457, 0
        %v480 = vsel %vm325, %v458, 0
        %482 = vmatprep.subr.bf16.mxu0 0
        %483 = vmatpush1.bf16.msra.mxu0 %v472
        %484 = vmatprep.subr.bf16.mxu0 0
        %485 = vmatpush1.bf16.msra.mxu0 %v473
        %486 = vmatprep.subr.bf16.mxu0 0
        %487 = vmatpush1.bf16.msra.mxu0 0
        %488 = vmatprep.subr.bf16.mxu0 0
        %489 = vmatpush1.bf16.msra.mxu0 0
        %490 = vmatprep.subr.bf16.mxu0 0
        %491 = vmatpush1.bf16.msra.mxu0 0
        %492 = vmatprep.subr.bf16.mxu0 0
        %493 = vmatpush1.bf16.msra.mxu0 0
        %494 = vmatprep.subr.bf16.mxu0 0
        %495 = vmatpush1.bf16.msra.mxu0 0
        %496 = vmatprep.subr.bf16.mxu0 0
        %497 = vmatpush1.bf16.msra.mxu0 0
        %498 = vmatprep.subr.bf16.mxu0 0
        %499 = vmatpush1.bf16.msra.mxu0 0
        %500 = vmatprep.subr.bf16.mxu0 0
        %501 = vmatpush1.bf16.msra.mxu0 0
        %502 = vmatprep.subr.bf16.mxu0 0
        %503 = vmatpush1.bf16.msra.mxu0 0
        %504 = vmatprep.subr.bf16.mxu0 0
        %505 = vmatpush1.bf16.msra.mxu0 0
        %506 = vmatprep.subr.bf16.mxu0 0
        %507 = vmatpush1.bf16.msra.mxu0 0
        %508 = vmatprep.subr.bf16.mxu0 0
        %509 = vmatpush1.bf16.msra.mxu0 0
        %510 = vmatprep.subr.bf16.mxu0 0
        %511 = vmatpush1.bf16.msra.mxu0 0
        %512 = vmatprep.subr.bf16.mxu0 0
        %513 = vmatpush1.bf16.msra.mxu0 0
        %514 = vmatprep.mubr.bf16.mxu0 0
        %515 = vmatmul.mubr.bf16.gmra.mrb[0].mxu0 %v477
        %v516 = vpop.f32.mrb[0].mxu0
        %v517 = vadd.f32 0.0, %v516
        %v518 = vpop.f32.mrb[0].mxu0
        %v519 = vpop.f32.mrb[0].mxu0
        %v520 = vadd.f32 0.0, %v519
        %v521 = vpop.f32.mrb[0].mxu0
        %522 = vmatprep.mubr.bf16.mxu0 0
        %523 = vmatmul.mubr.bf16.gmra.mrb[0].mxu0 %v480
        %v524 = vpop.f32.mrb[0].mxu0
        %v525 = vadd.f32 0.0, %v524
        %v526 = vpop.f32.mrb[0].mxu0
        %v527 = vpop.f32.mrb[0].mxu0
        %v528 = vadd.f32 0.0, %v527
        %v529 = vpop.f32.mrb[0].mxu0
        %530 = vdwg.mxu0
        %v535 = vunpack.c.l.b16 %v383
        %v536 = vunpack.c.l.b16 %v384
        %v537 = vunpack.c.l.b16 %v385
        %v538 = vunpack.c.l.b16 %v386
        %v539 = vpack.c.b16 %v536, %v535
        %v540 = vpack.c.b16 %v538, %v537
        %v544 = vsel %vm325, %v381, 0
        %v547 = vsel %vm325, %v382, 0
        %549 = vmatprep.subr.bf16.mxu0 0
        %550 = vmatpush1.bf16.msra.mxu0 %v539
        %551 = vmatprep.subr.bf16.mxu0 0
        %552 = vmatpush1.bf16.msra.mxu0 %v540
        %553 = vmatprep.subr.bf16.mxu0 0
        %554 = vmatpush1.bf16.msra.mxu0 0
        %555 = vmatprep.subr.bf16.mxu0 0
        %556 = vmatpush1.bf16.msra.mxu0 0
        %557 = vmatprep.subr.bf16.mxu0 0
        %558 = vmatpush1.bf16.msra.mxu0 0
        %559 = vmatprep.subr.bf16.mxu0 0
        %560 = vmatpush1.bf16.msra.mxu0 0
        %561 = vmatprep.subr.bf16.mxu0 0
        %562 = vmatpush1.bf16.msra.mxu0 0
        %563 = vmatprep.subr.bf16.mxu0 0
        %564 = vmatpush1.bf16.msra.mxu0 0
        %565 = vmatprep.subr.bf16.mxu0 0
        %566 = vmatpush1.bf16.msra.mxu0 0
        %567 = vmatprep.subr.bf16.mxu0 0
        %568 = vmatpush1.bf16.msra.mxu0 0
        %569 = vmatprep.subr.bf16.mxu0 0
        %570 = vmatpush1.bf16.msra.mxu0 0
        %571 = vmatprep.subr.bf16.mxu0 0
        %572 = vmatpush1.bf16.msra.mxu0 0
        %573 = vmatprep.subr.bf16.mxu0 0
        %574 = vmatpush1.bf16.msra.mxu0 0
        %575 = vmatprep.subr.bf16.mxu0 0
        %576 = vmatpush1.bf16.msra.mxu0 0
        %577 = vmatprep.subr.bf16.mxu0 0
        %578 = vmatpush1.bf16.msra.mxu0 0
        %579 = vmatprep.subr.bf16.mxu0 0
        %580 = vmatpush1.bf16.msra.mxu0 0
        %581 = vmatprep.mubr.bf16.mxu0 0
        %582 = vmatmul.mubr.bf16.gmra.mrb[0].mxu0 %v544
        %v583 = vpop.f32.mrb[0].mxu0
        %v584 = vadd.f32 %v517, %v583
        %v585 = vpop.f32.mrb[0].mxu0
        %v586 = vpop.f32.mrb[0].mxu0
        %v587 = vadd.f32 %v520, %v586
        %v588 = vpop.f32.mrb[0].mxu0
        %589 = vmatprep.mubr.bf16.mxu0 0
        %590 = vmatmul.mubr.bf16.gmra.mrb[0].mxu0 %v547
        %v591 = vpop.f32.mrb[0].mxu0
        %v592 = vadd.f32 %v525, %v591
        %v593 = vpop.f32.mrb[0].mxu0
        %v594 = vpop.f32.mrb[0].mxu0
        %v595 = vadd.f32 %v528, %v594
        %v596 = vpop.f32.mrb[0].mxu0
        %597 = vdwg.mxu0
        %s598 = scalar_lea.vmem %s1, 32
        %v599 = vld [vmem:[%s598] sm:$0xf]
        %v600 = vld [vmem:[%s598 + $0x4] sm:$0xf]
        %v601 = vld [vmem:[%s598 + $0x8] sm:$0xf]
        %v602 = vld [vmem:[%s598 + $0xc] sm:$0xf]
        %v607 = vunpack.c.l.b16 %v599
        %v608 = vunpack.c.l.b16 %v600
        %v609 = vunpack.c.l.b16 %v601
        %v610 = vunpack.c.l.b16 %v602
        %v611 = vpack.c.b16 %v608, %v607
        %v612 = vpack.c.b16 %v610, %v609
        %v614 = vsel %vm325, %v611, 0
        %v617 = vsel %vm325, %v612, 0
        %619 = vmatprep.subr.bf16.mxu0 0
        %620 = vmatpush1.bf16.msra.mxu0 %v309
        %621 = vmatprep.subr.bf16.mxu0 0
        %622 = vmatpush1.bf16.msra.mxu0 %v310
        %623 = vmatprep.subr.bf16.mxu0 0
        %624 = vmatpush1.bf16.msra.mxu0 0
        %625 = vmatprep.subr.bf16.mxu0 0
        %626 = vmatpush1.bf16.msra.mxu0 0
        %627 = vmatprep.subr.bf16.mxu0 0
        %628 = vmatpush1.bf16.msra.mxu0 0
        %629 = vmatprep.subr.bf16.mxu0 0
        %630 = vmatpush1.bf16.msra.mxu0 0
        %631 = vmatprep.subr.bf16.mxu0 0
        %632 = vmatpush1.bf16.msra.mxu0 0
        %633 = vmatprep.subr.bf16.mxu0 0
        %634 = vmatpush1.bf16.msra.mxu0 0
        %635 = vmatprep.subr.bf16.mxu0 0
        %636 = vmatpush1.bf16.msra.mxu0 0
        %637 = vmatprep.subr.bf16.mxu0 0
        %638 = vmatpush1.bf16.msra.mxu0 0
        %639 = vmatprep.subr.bf16.mxu0 0
        %640 = vmatpush1.bf16.msra.mxu0 0
        %641 = vmatprep.subr.bf16.mxu0 0
        %642 = vmatpush1.bf16.msra.mxu0 0
        %643 = vmatprep.subr.bf16.mxu0 0
        %644 = vmatpush1.bf16.msra.mxu0 0
        %645 = vmatprep.subr.bf16.mxu0 0
        %646 = vmatpush1.bf16.msra.mxu0 0
        %647 = vmatprep.subr.bf16.mxu0 0
        %648 = vmatpush1.bf16.msra.mxu0 0
        %649 = vmatprep.subr.bf16.mxu0 0
        %650 = vmatpush1.bf16.msra.mxu0 0
        %651 = vmatprep.mubr.bf16.mxu0 0
        %652 = vmatmul.mubr.bf16.gmra.mrb[0].mxu0 %v614
        %v653 = vpop.f32.mrb[0].mxu0
        %v654 = vadd.f32 0.0, %v653
        %v655 = vpop.f32.mrb[0].mxu0
        %v656 = vpop.f32.mrb[0].mxu0
        %v657 = vadd.f32 0.0, %v656
        %v658 = vpop.f32.mrb[0].mxu0
        %659 = vmatprep.mubr.bf16.mxu0 0
        %660 = vmatmul.mubr.bf16.gmra.mrb[0].mxu0 %v617
        %v661 = vpop.f32.mrb[0].mxu0
        %v662 = vadd.f32 0.0, %v661
        %v663 = vpop.f32.mrb[0].mxu0
        %v664 = vpop.f32.mrb[0].mxu0
        %v665 = vadd.f32 0.0, %v664
        %v666 = vpop.f32.mrb[0].mxu0
        %667 = vdwg.mxu0
        %v668 = vpack.c.bf16 %v657, %v654
        %v669 = vpack.c.bf16 %v665, %v662
        %s670 = scalar_lea.vmem %s224, 32 [#allocation4]
        %v671 = vld [vmem:[%s670] sm:$0xf]
        %v672 = vld [vmem:[%s670 + $0x4] sm:$0xf]
        %v673 = vld [vmem:[%s670 + $0x8] sm:$0xf]
        %v674 = vld [vmem:[%s670 + $0xc] sm:$0xf]
        %v679 = vunpack.c.l.b16 %v671
        %v680 = vunpack.c.l.b16 %v672
        %v681 = vunpack.c.l.b16 %v673
        %v682 = vunpack.c.l.b16 %v674
        %v683 = vpack.c.b16 %v680, %v679
        %v684 = vpack.c.b16 %v682, %v681
        %v688 = vsel %vm325, %v668, 0
        %v691 = vsel %vm325, %v669, 0
        %693 = vmatprep.subr.bf16.mxu0 0
        %694 = vmatpush1.bf16.msra.mxu0 %v683
        %695 = vmatprep.subr.bf16.mxu0 0
        %696 = vmatpush1.bf16.msra.mxu0 %v684
        %697 = vmatprep.subr.bf16.mxu0 0
        %698 = vmatpush1.bf16.msra.mxu0 0
        %699 = vmatprep.subr.bf16.mxu0 0
        %700 = vmatpush1.bf16.msra.mxu0 0
        %701 = vmatprep.subr.bf16.mxu0 0
        %702 = vmatpush1.bf16.msra.mxu0 0
        %703 = vmatprep.subr.bf16.mxu0 0
        %704 = vmatpush1.bf16.msra.mxu0 0
        %705 = vmatprep.subr.bf16.mxu0 0
        %706 = vmatpush1.bf16.msra.mxu0 0
        %707 = vmatprep.subr.bf16.mxu0 0
        %708 = vmatpush1.bf16.msra.mxu0 0
        %709 = vmatprep.subr.bf16.mxu0 0
        %710 = vmatpush1.bf16.msra.mxu0 0
        %711 = vmatprep.subr.bf16.mxu0 0
        %712 = vmatpush1.bf16.msra.mxu0 0
        %713 = vmatprep.subr.bf16.mxu0 0
        %714 = vmatpush1.bf16.msra.mxu0 0
        %715 = vmatprep.subr.bf16.mxu0 0
        %716 = vmatpush1.bf16.msra.mxu0 0
        %717 = vmatprep.subr.bf16.mxu0 0
        %718 = vmatpush1.bf16.msra.mxu0 0
        %719 = vmatprep.subr.bf16.mxu0 0
        %720 = vmatpush1.bf16.msra.mxu0 0
        %721 = vmatprep.subr.bf16.mxu0 0
        %722 = vmatpush1.bf16.msra.mxu0 0
        %723 = vmatprep.subr.bf16.mxu0 0
        %724 = vmatpush1.bf16.msra.mxu0 0
        %725 = vmatprep.mubr.bf16.mxu0 0
        %726 = vmatmul.mubr.bf16.gmra.mrb[0].mxu0 %v688
        %v727 = vpop.f32.mrb[0].mxu0
        %v728 = vadd.f32 0.0, %v727
        %v729 = vpop.f32.mrb[0].mxu0
        %v730 = vpop.f32.mrb[0].mxu0
        %v731 = vadd.f32 0.0, %v730
        %v732 = vpop.f32.mrb[0].mxu0
        %733 = vmatprep.mubr.bf16.mxu0 0
        %734 = vmatmul.mubr.bf16.gmra.mrb[0].mxu0 %v691
        %v735 = vpop.f32.mrb[0].mxu0
        %v736 = vadd.f32 0.0, %v735
        %v737 = vpop.f32.mrb[0].mxu0
        %v738 = vpop.f32.mrb[0].mxu0
        %v739 = vadd.f32 0.0, %v738
        %v740 = vpop.f32.mrb[0].mxu0
        %741 = vdwg.mxu0
        %v742 = vadd.f32 %v584, %v728
        %v743 = vadd.f32 %v587, %v731
        %v744 = vadd.f32 %v592, %v736
        %v745 = vadd.f32 %v595, %v739
        %s746 = scalar_lea.vmem %s1, 48
        %v747 = vld [vmem:[%s746] sm:$0xf]
        %v748 = vld [vmem:[%s746 + $0x4] sm:$0xf]
        %v749 = vld [vmem:[%s746 + $0x8] sm:$0xf]
        %v750 = vld [vmem:[%s746 + $0xc] sm:$0xf]
        %v755 = vunpack.c.l.b16 %v747
        %v756 = vunpack.c.l.b16 %v748
        %v757 = vunpack.c.l.b16 %v749
        %v758 = vunpack.c.l.b16 %v750
        %v759 = vpack.c.b16 %v756, %v755
        %v760 = vpack.c.b16 %v758, %v757
        %v762 = vsel %vm325, %v759, 0
        %v765 = vsel %vm325, %v760, 0
        %767 = vmatprep.subr.bf16.mxu0 0
        %768 = vmatpush1.bf16.msra.mxu0 %v309
        %769 = vmatprep.subr.bf16.mxu0 0
        %770 = vmatpush1.bf16.msra.mxu0 %v310
        %771 = vmatprep.subr.bf16.mxu0 0
        %772 = vmatpush1.bf16.msra.mxu0 0
        %773 = vmatprep.subr.bf16.mxu0 0
        %774 = vmatpush1.bf16.msra.mxu0 0
        %775 = vmatprep.subr.bf16.mxu0 0
        %776 = vmatpush1.bf16.msra.mxu0 0
        %777 = vmatprep.subr.bf16.mxu0 0
        %778 = vmatpush1.bf16.msra.mxu0 0
        %779 = vmatprep.subr.bf16.mxu0 0
        %780 = vmatpush1.bf16.msra.mxu0 0
        %781 = vmatprep.subr.bf16.mxu0 0
        %782 = vmatpush1.bf16.msra.mxu0 0
        %783 = vmatprep.subr.bf16.mxu0 0
        %784 = vmatpush1.bf16.msra.mxu0 0
        %785 = vmatprep.subr.bf16.mxu0 0
        %786 = vmatpush1.bf16.msra.mxu0 0
        %787 = vmatprep.subr.bf16.mxu0 0
        %788 = vmatpush1.bf16.msra.mxu0 0
        %789 = vmatprep.subr.bf16.mxu0 0
        %790 = vmatpush1.bf16.msra.mxu0 0
        %791 = vmatprep.subr.bf16.mxu0 0
        %792 = vmatpush1.bf16.msra.mxu0 0
        %793 = vmatprep.subr.bf16.mxu0 0
        %794 = vmatpush1.bf16.msra.mxu0 0
        %795 = vmatprep.subr.bf16.mxu0 0
        %796 = vmatpush1.bf16.msra.mxu0 0
        %797 = vmatprep.subr.bf16.mxu0 0
        %798 = vmatpush1.bf16.msra.mxu0 0
        %799 = vmatprep.mubr.bf16.mxu0 0
        %800 = vmatmul.mubr.bf16.gmra.mrb[0].mxu0 %v762
        %v801 = vpop.f32.mrb[0].mxu0
        %v802 = vadd.f32 0.0, %v801
        %v803 = vpop.f32.mrb[0].mxu0
        %v804 = vpop.f32.mrb[0].mxu0
        %v805 = vadd.f32 0.0, %v804
        %v806 = vpop.f32.mrb[0].mxu0
        %807 = vmatprep.mubr.bf16.mxu0 0
        %808 = vmatmul.mubr.bf16.gmra.mrb[0].mxu0 %v765
        %v809 = vpop.f32.mrb[0].mxu0
        %v810 = vadd.f32 0.0, %v809
        %v811 = vpop.f32.mrb[0].mxu0
        %v812 = vpop.f32.mrb[0].mxu0
        %v813 = vadd.f32 0.0, %v812
        %v814 = vpop.f32.mrb[0].mxu0
        %815 = vdwg.mxu0
        %v816 = vpack.c.bf16 %v805, %v802
        %v817 = vpack.c.bf16 %v813, %v810
        %s818 = scalar_lea.vmem %s224, 48 [#allocation4]
        %v819 = vld [vmem:[%s818] sm:$0xf]
        %v820 = vld [vmem:[%s818 + $0x4] sm:$0xf]
        %v821 = vld [vmem:[%s818 + $0x8] sm:$0xf]
        %v822 = vld [vmem:[%s818 + $0xc] sm:$0xf]
        %v827 = vunpack.c.l.b16 %v819
        %v828 = vunpack.c.l.b16 %v820
        %v829 = vunpack.c.l.b16 %v821
        %v830 = vunpack.c.l.b16 %v822
        %v831 = vpack.c.b16 %v828, %v827
        %v832 = vpack.c.b16 %v830, %v829
        %v836 = vsel %vm325, %v816, 0
        %v839 = vsel %vm325, %v817, 0
        %841 = vmatprep.subr.bf16.mxu0 0
        %842 = vmatpush1.bf16.msra.mxu0 %v831
        %843 = vmatprep.subr.bf16.mxu0 0
        %844 = vmatpush1.bf16.msra.mxu0 %v832
        %845 = vmatprep.subr.bf16.mxu0 0
        %846 = vmatpush1.bf16.msra.mxu0 0
        %847 = vmatprep.subr.bf16.mxu0 0
        %848 = vmatpush1.bf16.msra.mxu0 0
        %849 = vmatprep.subr.bf16.mxu0 0
        %850 = vmatpush1.bf16.msra.mxu0 0
        %851 = vmatprep.subr.bf16.mxu0 0
        %852 = vmatpush1.bf16.msra.mxu0 0
        %853 = vmatprep.subr.bf16.mxu0 0
        %854 = vmatpush1.bf16.msra.mxu0 0
        %855 = vmatprep.subr.bf16.mxu0 0
        %856 = vmatpush1.bf16.msra.mxu0 0
        %857 = vmatprep.subr.bf16.mxu0 0
        %858 = vmatpush1.bf16.msra.mxu0 0
        %859 = vmatprep.subr.bf16.mxu0 0
        %860 = vmatpush1.bf16.msra.mxu0 0
        %861 = vmatprep.subr.bf16.mxu0 0
        %862 = vmatpush1.bf16.msra.mxu0 0
        %863 = vmatprep.subr.bf16.mxu0 0
        %864 = vmatpush1.bf16.msra.mxu0 0
        %865 = vmatprep.subr.bf16.mxu0 0
        %866 = vmatpush1.bf16.msra.mxu0 0
        %867 = vmatprep.subr.bf16.mxu0 0
        %868 = vmatpush1.bf16.msra.mxu0 0
        %869 = vmatprep.subr.bf16.mxu0 0
        %870 = vmatpush1.bf16.msra.mxu0 0
        %871 = vmatprep.subr.bf16.mxu0 0
        %872 = vmatpush1.bf16.msra.mxu0 0
        %873 = vmatprep.mubr.bf16.mxu0 0
        %874 = vmatmul.mubr.bf16.gmra.mrb[0].mxu0 %v836
        %v875 = vpop.f32.mrb[0].mxu0
        %v876 = vadd.f32 0.0, %v875
        %v877 = vpop.f32.mrb[0].mxu0
        %v878 = vpop.f32.mrb[0].mxu0
        %v879 = vadd.f32 0.0, %v878
        %v880 = vpop.f32.mrb[0].mxu0
        %881 = vmatprep.mubr.bf16.mxu0 0
        %882 = vmatmul.mubr.bf16.gmra.mrb[0].mxu0 %v839
        %v883 = vpop.f32.mrb[0].mxu0
        %v884 = vadd.f32 0.0, %v883
        %v885 = vpop.f32.mrb[0].mxu0
        %v886 = vpop.f32.mrb[0].mxu0
        %v887 = vadd.f32 0.0, %v886
        %v888 = vpop.f32.mrb[0].mxu0
        %889 = vdwg.mxu0
        %v890 = vadd.f32 %v742, %v876
        %v891 = vadd.f32 %v743, %v879
        %v892 = vadd.f32 %v744, %v884
        %v893 = vadd.f32 %v745, %v887
        %s894 = scalar_lea.vmem %s1, 64
        %v895 = vld [vmem:[%s894] sm:$0xf]
        %v896 = vld [vmem:[%s894 + $0x4] sm:$0xf]
        %v897 = vld [vmem:[%s894 + $0x8] sm:$0xf]
        %v898 = vld [vmem:[%s894 + $0xc] sm:$0xf]
        %v903 = vunpack.c.l.b16 %v895
        %v904 = vunpack.c.l.b16 %v896
        %v905 = vunpack.c.l.b16 %v897
        %v906 = vunpack.c.l.b16 %v898
        %v907 = vpack.c.b16 %v904, %v903
        %v908 = vpack.c.b16 %v906, %v905
        %v910 = vsel %vm325, %v907, 0
        %v913 = vsel %vm325, %v908, 0
        %915 = vmatprep.subr.bf16.mxu0 0
        %916 = vmatpush1.bf16.msra.mxu0 %v309
        %917 = vmatprep.subr.bf16.mxu0 0
        %918 = vmatpush1.bf16.msra.mxu0 %v310
        %919 = vmatprep.subr.bf16.mxu0 0
        %920 = vmatpush1.bf16.msra.mxu0 0
        %921 = vmatprep.subr.bf16.mxu0 0
        %922 = vmatpush1.bf16.msra.mxu0 0
        %923 = vmatprep.subr.bf16.mxu0 0
        %924 = vmatpush1.bf16.msra.mxu0 0
        %925 = vmatprep.subr.bf16.mxu0 0
        %926 = vmatpush1.bf16.msra.mxu0 0
        %927 = vmatprep.subr.bf16.mxu0 0
        %928 = vmatpush1.bf16.msra.mxu0 0
        %929 = vmatprep.subr.bf16.mxu0 0
        %930 = vmatpush1.bf16.msra.mxu0 0
        %931 = vmatprep.subr.bf16.mxu0 0
        %932 = vmatpush1.bf16.msra.mxu0 0
        %933 = vmatprep.subr.bf16.mxu0 0
        %934 = vmatpush1.bf16.msra.mxu0 0
        %935 = vmatprep.subr.bf16.mxu0 0
        %936 = vmatpush1.bf16.msra.mxu0 0
        %937 = vmatprep.subr.bf16.mxu0 0
        %938 = vmatpush1.bf16.msra.mxu0 0
        %939 = vmatprep.subr.bf16.mxu0 0
        %940 = vmatpush1.bf16.msra.mxu0 0
        %941 = vmatprep.subr.bf16.mxu0 0
        %942 = vmatpush1.bf16.msra.mxu0 0
        %943 = vmatprep.subr.bf16.mxu0 0
        %944 = vmatpush1.bf16.msra.mxu0 0
        %945 = vmatprep.subr.bf16.mxu0 0
        %946 = vmatpush1.bf16.msra.mxu0 0
        %947 = vmatprep.mubr.bf16.mxu0 0
        %948 = vmatmul.mubr.bf16.gmra.mrb[0].mxu0 %v910
        %v949 = vpop.f32.mrb[0].mxu0
        %v950 = vadd.f32 0.0, %v949
        %v951 = vpop.f32.mrb[0].mxu0
        %v952 = vpop.f32.mrb[0].mxu0
        %v953 = vadd.f32 0.0, %v952
        %v954 = vpop.f32.mrb[0].mxu0
        %955 = vmatprep.mubr.bf16.mxu0 0
        %956 = vmatmul.mubr.bf16.gmra.mrb[0].mxu0 %v913
        %v957 = vpop.f32.mrb[0].mxu0
        %v958 = vadd.f32 0.0, %v957
        %v959 = vpop.f32.mrb[0].mxu0
        %v960 = vpop.f32.mrb[0].mxu0
        %v961 = vadd.f32 0.0, %v960
        %v962 = vpop.f32.mrb[0].mxu0
        %963 = vdwg.mxu0
        %v964 = vpack.c.bf16 %v953, %v950
        %v965 = vpack.c.bf16 %v961, %v958
        %s966 = scalar_lea.vmem %s224, 64 [#allocation4]
        %v967 = vld [vmem:[%s966] sm:$0xf]
        %v968 = vld [vmem:[%s966 + $0x4] sm:$0xf]
        %v969 = vld [vmem:[%s966 + $0x8] sm:$0xf]
        %v970 = vld [vmem:[%s966 + $0xc] sm:$0xf]
        %v975 = vunpack.c.l.b16 %v967
        %v976 = vunpack.c.l.b16 %v968
        %v977 = vunpack.c.l.b16 %v969
        %v978 = vunpack.c.l.b16 %v970
        %v979 = vpack.c.b16 %v976, %v975
        %v980 = vpack.c.b16 %v978, %v977
        %v984 = vsel %vm325, %v964, 0
        %v987 = vsel %vm325, %v965, 0
        %989 = vmatprep.subr.bf16.mxu0 0
        %990 = vmatpush1.bf16.msra.mxu0 %v979
        %991 = vmatprep.subr.bf16.mxu0 0
        %992 = vmatpush1.bf16.msra.mxu0 %v980
        %993 = vmatprep.subr.bf16.mxu0 0
        %994 = vmatpush1.bf16.msra.mxu0 0
        %995 = vmatprep.subr.bf16.mxu0 0
        %996 = vmatpush1.bf16.msra.mxu0 0
        %997 = vmatprep.subr.bf16.mxu0 0
        %998 = vmatpush1.bf16.msra.mxu0 0
        %999 = vmatprep.subr.bf16.mxu0 0
        %1000 = vmatpush1.bf16.msra.mxu0 0
        %1001 = vmatprep.subr.bf16.mxu0 0
        %1002 = vmatpush1.bf16.msra.mxu0 0
        %1003 = vmatprep.subr.bf16.mxu0 0
        %1004 = vmatpush1.bf16.msra.mxu0 0
        %1005 = vmatprep.subr.bf16.mxu0 0
        %1006 = vmatpush1.bf16.msra.mxu0 0
        %1007 = vmatprep.subr.bf16.mxu0 0
        %1008 = vmatpush1.bf16.msra.mxu0 0
        %1009 = vmatprep.subr.bf16.mxu0 0
        %1010 = vmatpush1.bf16.msra.mxu0 0
        %1011 = vmatprep.subr.bf16.mxu0 0
        %1012 = vmatpush1.bf16.msra.mxu0 0
        %1013 = vmatprep.subr.bf16.mxu0 0
        %1014 = vmatpush1.bf16.msra.mxu0 0
        %1015 = vmatprep.subr.bf16.mxu0 0
        %1016 = vmatpush1.bf16.msra.mxu0 0
        %1017 = vmatprep.subr.bf16.mxu0 0
        %1018 = vmatpush1.bf16.msra.mxu0 0
        %1019 = vmatprep.subr.bf16.mxu0 0
        %1020 = vmatpush1.bf16.msra.mxu0 0
        %1021 = vmatprep.mubr.bf16.mxu0 0
        %1022 = vmatmul.mubr.bf16.gmra.mrb[0].mxu0 %v984
        %v1023 = vpop.f32.mrb[0].mxu0
        %v1024 = vadd.f32 0.0, %v1023
        %v1025 = vpop.f32.mrb[0].mxu0
        %v1026 = vpop.f32.mrb[0].mxu0
        %v1027 = vadd.f32 0.0, %v1026
        %v1028 = vpop.f32.mrb[0].mxu0
        %1029 = vmatprep.mubr.bf16.mxu0 0
        %1030 = vmatmul.mubr.bf16.gmra.mrb[0].mxu0 %v987
        %v1031 = vpop.f32.mrb[0].mxu0
        %v1032 = vadd.f32 0.0, %v1031
        %v1033 = vpop.f32.mrb[0].mxu0
        %v1034 = vpop.f32.mrb[0].mxu0
        %v1035 = vadd.f32 0.0, %v1034
        %v1036 = vpop.f32.mrb[0].mxu0
        %1037 = vdwg.mxu0
        %v1038 = vadd.f32 %v890, %v1024
        %v1039 = vadd.f32 %v891, %v1027
        %v1040 = vadd.f32 %v892, %v1032
        %v1041 = vadd.f32 %v893, %v1035
        %s1042 = scalar_lea.vmem %s1, 80
        %v1043 = vld [vmem:[%s1042] sm:$0xf]
        %v1044 = vld [vmem:[%s1042 + $0x4] sm:$0xf]
        %v1045 = vld [vmem:[%s1042 + $0x8] sm:$0xf]
        %v1046 = vld [vmem:[%s1042 + $0xc] sm:$0xf]
        %v1051 = vunpack.c.l.b16 %v1043
        %v1052 = vunpack.c.l.b16 %v1044
        %v1053 = vunpack.c.l.b16 %v1045
        %v1054 = vunpack.c.l.b16 %v1046
        %v1055 = vpack.c.b16 %v1052, %v1051
        %v1056 = vpack.c.b16 %v1054, %v1053
        %v1058 = vsel %vm325, %v1055, 0
        %v1061 = vsel %vm325, %v1056, 0
        %1063 = vmatprep.subr.bf16.mxu0 0
        %1064 = vmatpush1.bf16.msra.mxu0 %v309
        %1065 = vmatprep.subr.bf16.mxu0 0
        %1066 = vmatpush1.bf16.msra.mxu0 %v310
        %1067 = vmatprep.subr.bf16.mxu0 0
        %1068 = vmatpush1.bf16.msra.mxu0 0
        %1069 = vmatprep.subr.bf16.mxu0 0
        %1070 = vmatpush1.bf16.msra.mxu0 0
        %1071 = vmatprep.subr.bf16.mxu0 0
        %1072 = vmatpush1.bf16.msra.mxu0 0
        %1073 = vmatprep.subr.bf16.mxu0 0
        %1074 = vmatpush1.bf16.msra.mxu0 0
        %1075 = vmatprep.subr.bf16.mxu0 0
        %1076 = vmatpush1.bf16.msra.mxu0 0
        %1077 = vmatprep.subr.bf16.mxu0 0
        %1078 = vmatpush1.bf16.msra.mxu0 0
        %1079 = vmatprep.subr.bf16.mxu0 0
        %1080 = vmatpush1.bf16.msra.mxu0 0
        %1081 = vmatprep.subr.bf16.mxu0 0
        %1082 = vmatpush1.bf16.msra.mxu0 0
        %1083 = vmatprep.subr.bf16.mxu0 0
        %1084 = vmatpush1.bf16.msra.mxu0 0
        %1085 = vmatprep.subr.bf16.mxu0 0
        %1086 = vmatpush1.bf16.msra.mxu0 0
        %1087 = vmatprep.subr.bf16.mxu0 0
        %1088 = vmatpush1.bf16.msra.mxu0 0
        %1089 = vmatprep.subr.bf16.mxu0 0
        %1090 = vmatpush1.bf16.msra.mxu0 0
        %1091 = vmatprep.subr.bf16.mxu0 0
        %1092 = vmatpush1.bf16.msra.mxu0 0
        %1093 = vmatprep.subr.bf16.mxu0 0
        %1094 = vmatpush1.bf16.msra.mxu0 0
        %1095 = vmatprep.mubr.bf16.mxu0 0
        %1096 = vmatmul.mubr.bf16.gmra.mrb[0].mxu0 %v1058
        %v1097 = vpop.f32.mrb[0].mxu0
        %v1098 = vadd.f32 0.0, %v1097
        %v1099 = vpop.f32.mrb[0].mxu0
        %v1100 = vpop.f32.mrb[0].mxu0
        %v1101 = vadd.f32 0.0, %v1100
        %v1102 = vpop.f32.mrb[0].mxu0
        %1103 = vmatprep.mubr.bf16.mxu0 0
        %1104 = vmatmul.mubr.bf16.gmra.mrb[0].mxu0 %v1061
        %v1105 = vpop.f32.mrb[0].mxu0
        %v1106 = vadd.f32 0.0, %v1105
        %v1107 = vpop.f32.mrb[0].mxu0
        %v1108 = vpop.f32.mrb[0].mxu0
        %v1109 = vadd.f32 0.0, %v1108
        %v1110 = vpop.f32.mrb[0].mxu0
        %1111 = vdwg.mxu0
        %v1112 = vpack.c.bf16 %v1101, %v1098
        %v1113 = vpack.c.bf16 %v1109, %v1106
        %s1114 = scalar_lea.vmem %s224, 80 [#allocation4]
        %v1115 = vld [vmem:[%s1114] sm:$0xf]
        %v1116 = vld [vmem:[%s1114 + $0x4] sm:$0xf]
        %v1117 = vld [vmem:[%s1114 + $0x8] sm:$0xf]
        %v1118 = vld [vmem:[%s1114 + $0xc] sm:$0xf]
        %v1123 = vunpack.c.l.b16 %v1115
        %v1124 = vunpack.c.l.b16 %v1116
        %v1125 = vunpack.c.l.b16 %v1117
        %v1126 = vunpack.c.l.b16 %v1118
        %v1127 = vpack.c.b16 %v1124, %v1123
        %v1128 = vpack.c.b16 %v1126, %v1125
        %v1132 = vsel %vm325, %v1112, 0
        %v1135 = vsel %vm325, %v1113, 0
        %1137 = vmatprep.subr.bf16.mxu0 0
        %1138 = vmatpush1.bf16.msra.mxu0 %v1127
        %1139 = vmatprep.subr.bf16.mxu0 0
        %1140 = vmatpush1.bf16.msra.mxu0 %v1128
        %1141 = vmatprep.subr.bf16.mxu0 0
        %1142 = vmatpush1.bf16.msra.mxu0 0
        %1143 = vmatprep.subr.bf16.mxu0 0
        %1144 = vmatpush1.bf16.msra.mxu0 0
        %1145 = vmatprep.subr.bf16.mxu0 0
        %1146 = vmatpush1.bf16.msra.mxu0 0
        %1147 = vmatprep.subr.bf16.mxu0 0
        %1148 = vmatpush1.bf16.msra.mxu0 0
        %1149 = vmatprep.subr.bf16.mxu0 0
        %1150 = vmatpush1.bf16.msra.mxu0 0
        %1151 = vmatprep.subr.bf16.mxu0 0
        %1152 = vmatpush1.bf16.msra.mxu0 0
        %1153 = vmatprep.subr.bf16.mxu0 0
        %1154 = vmatpush1.bf16.msra.mxu0 0
        %1155 = vmatprep.subr.bf16.mxu0 0
        %1156 = vmatpush1.bf16.msra.mxu0 0
        %1157 = vmatprep.subr.bf16.mxu0 0
        %1158 = vmatpush1.bf16.msra.mxu0 0
        %1159 = vmatprep.subr.bf16.mxu0 0
        %1160 = vmatpush1.bf16.msra.mxu0 0
        %1161 = vmatprep.subr.bf16.mxu0 0
        %1162 = vmatpush1.bf16.msra.mxu0 0
        %1163 = vmatprep.subr.bf16.mxu0 0
        %1164 = vmatpush1.bf16.msra.mxu0 0
        %1165 = vmatprep.subr.bf16.mxu0 0
        %1166 = vmatpush1.bf16.msra.mxu0 0
        %1167 = vmatprep.subr.bf16.mxu0 0
        %1168 = vmatpush1.bf16.msra.mxu0 0
        %1169 = vmatprep.mubr.bf16.mxu0 0
        %1170 = vmatmul.mubr.bf16.gmra.mrb[0].mxu0 %v1132
        %v1171 = vpop.f32.mrb[0].mxu0
        %v1172 = vadd.f32 0.0, %v1171
        %v1173 = vpop.f32.mrb[0].mxu0
        %v1174 = vpop.f32.mrb[0].mxu0
        %v1175 = vadd.f32 0.0, %v1174
        %v1176 = vpop.f32.mrb[0].mxu0
        %1177 = vmatprep.mubr.bf16.mxu0 0
        %1178 = vmatmul.mubr.bf16.gmra.mrb[0].mxu0 %v1135
        %v1179 = vpop.f32.mrb[0].mxu0
        %v1180 = vadd.f32 0.0, %v1179
        %v1181 = vpop.f32.mrb[0].mxu0
        %v1182 = vpop.f32.mrb[0].mxu0
        %v1183 = vadd.f32 0.0, %v1182
        %v1184 = vpop.f32.mrb[0].mxu0
        %1185 = vdwg.mxu0
        %v1186 = vadd.f32 %v1038, %v1172
        %v1187 = vadd.f32 %v1039, %v1175
        %v1188 = vadd.f32 %v1040, %v1180
        %v1189 = vadd.f32 %v1041, %v1183
        %s1190 = scalar_lea.vmem %s1, 96
        %v1191 = vld [vmem:[%s1190] sm:$0xf]
        %v1192 = vld [vmem:[%s1190 + $0x4] sm:$0xf]
        %v1193 = vld [vmem:[%s1190 + $0x8] sm:$0xf]
        %v1194 = vld [vmem:[%s1190 + $0xc] sm:$0xf]
        %v1199 = vunpack.c.l.b16 %v1191
        %v1200 = vunpack.c.l.b16 %v1192
        %v1201 = vunpack.c.l.b16 %v1193
        %v1202 = vunpack.c.l.b16 %v1194
        %v1203 = vpack.c.b16 %v1200, %v1199
        %v1204 = vpack.c.b16 %v1202, %v1201
        %v1206 = vsel %vm325, %v1203, 0
        %v1209 = vsel %vm325, %v1204, 0
        %1211 = vmatprep.subr.bf16.mxu0 0
        %1212 = vmatpush1.bf16.msra.mxu0 %v309
        %1213 = vmatprep.subr.bf16.mxu0 0
        %1214 = vmatpush1.bf16.msra.mxu0 %v310
        %1215 = vmatprep.subr.bf16.mxu0 0
        %1216 = vmatpush1.bf16.msra.mxu0 0
        %1217 = vmatprep.subr.bf16.mxu0 0
        %1218 = vmatpush1.bf16.msra.mxu0 0
        %1219 = vmatprep.subr.bf16.mxu0 0
        %1220 = vmatpush1.bf16.msra.mxu0 0
        %1221 = vmatprep.subr.bf16.mxu0 0
        %1222 = vmatpush1.bf16.msra.mxu0 0
        %1223 = vmatprep.subr.bf16.mxu0 0
        %1224 = vmatpush1.bf16.msra.mxu0 0
        %1225 = vmatprep.subr.bf16.mxu0 0
        %1226 = vmatpush1.bf16.msra.mxu0 0
        %1227 = vmatprep.subr.bf16.mxu0 0
        %1228 = vmatpush1.bf16.msra.mxu0 0
        %1229 = vmatprep.subr.bf16.mxu0 0
        %1230 = vmatpush1.bf16.msra.mxu0 0
        %1231 = vmatprep.subr.bf16.mxu0 0
        %1232 = vmatpush1.bf16.msra.mxu0 0
        %1233 = vmatprep.subr.bf16.mxu0 0
        %1234 = vmatpush1.bf16.msra.mxu0 0
        %1235 = vmatprep.subr.bf16.mxu0 0
        %1236 = vmatpush1.bf16.msra.mxu0 0
        %1237 = vmatprep.subr.bf16.mxu0 0
        %1238 = vmatpush1.bf16.msra.mxu0 0
        %1239 = vmatprep.subr.bf16.mxu0 0
        %1240 = vmatpush1.bf16.msra.mxu0 0
        %1241 = vmatprep.subr.bf16.mxu0 0
        %1242 = vmatpush1.bf16.msra.mxu0 0
        %1243 = vmatprep.mubr.bf16.mxu0 0
        %1244 = vmatmul.mubr.bf16.gmra.mrb[0].mxu0 %v1206
        %v1245 = vpop.f32.mrb[0].mxu0
        %v1246 = vadd.f32 0.0, %v1245
        %v1247 = vpop.f32.mrb[0].mxu0
        %v1248 = vpop.f32.mrb[0].mxu0
        %v1249 = vadd.f32 0.0, %v1248
        %v1250 = vpop.f32.mrb[0].mxu0
        %1251 = vmatprep.mubr.bf16.mxu0 0
        %1252 = vmatmul.mubr.bf16.gmra.mrb[0].mxu0 %v1209
        %v1253 = vpop.f32.mrb[0].mxu0
        %v1254 = vadd.f32 0.0, %v1253
        %v1255 = vpop.f32.mrb[0].mxu0
        %v1256 = vpop.f32.mrb[0].mxu0
        %v1257 = vadd.f32 0.0, %v1256
        %v1258 = vpop.f32.mrb[0].mxu0
        %1259 = vdwg.mxu0
        %v1260 = vpack.c.bf16 %v1249, %v1246
        %v1261 = vpack.c.bf16 %v1257, %v1254
        %s1262 = scalar_lea.vmem %s224, 96 [#allocation4]
        %v1263 = vld [vmem:[%s1262] sm:$0xf]
        %v1264 = vld [vmem:[%s1262 + $0x4] sm:$0xf]
        %v1265 = vld [vmem:[%s1262 + $0x8] sm:$0xf]
        %v1266 = vld [vmem:[%s1262 + $0xc] sm:$0xf]
        %v1271 = vunpack.c.l.b16 %v1263
        %v1272 = vunpack.c.l.b16 %v1264
        %v1273 = vunpack.c.l.b16 %v1265
        %v1274 = vunpack.c.l.b16 %v1266
        %v1275 = vpack.c.b16 %v1272, %v1271
        %v1276 = vpack.c.b16 %v1274, %v1273
        %v1280 = vsel %vm325, %v1260, 0
        %v1283 = vsel %vm325, %v1261, 0
        %1285 = vmatprep.subr.bf16.mxu0 0
        %1286 = vmatpush1.bf16.msra.mxu0 %v1275
        %1287 = vmatprep.subr.bf16.mxu0 0
        %1288 = vmatpush1.bf16.msra.mxu0 %v1276
        %1289 = vmatprep.subr.bf16.mxu0 0
        %1290 = vmatpush1.bf16.msra.mxu0 0
        %1291 = vmatprep.subr.bf16.mxu0 0
        %1292 = vmatpush1.bf16.msra.mxu0 0
        %1293 = vmatprep.subr.bf16.mxu0 0
        %1294 = vmatpush1.bf16.msra.mxu0 0
        %1295 = vmatprep.subr.bf16.mxu0 0
        %1296 = vmatpush1.bf16.msra.mxu0 0
        %1297 = vmatprep.subr.bf16.mxu0 0
        %1298 = vmatpush1.bf16.msra.mxu0 0
        %1299 = vmatprep.subr.bf16.mxu0 0
        %1300 = vmatpush1.bf16.msra.mxu0 0
        %1301 = vmatprep.subr.bf16.mxu0 0
        %1302 = vmatpush1.bf16.msra.mxu0 0
        %1303 = vmatprep.subr.bf16.mxu0 0
        %1304 = vmatpush1.bf16.msra.mxu0 0
        %1305 = vmatprep.subr.bf16.mxu0 0
        %1306 = vmatpush1.bf16.msra.mxu0 0
        %1307 = vmatprep.subr.bf16.mxu0 0
        %1308 = vmatpush1.bf16.msra.mxu0 0
        %1309 = vmatprep.subr.bf16.mxu0 0
        %1310 = vmatpush1.bf16.msra.mxu0 0
        %1311 = vmatprep.subr.bf16.mxu0 0
        %1312 = vmatpush1.bf16.msra.mxu0 0
        %1313 = vmatprep.subr.bf16.mxu0 0
        %1314 = vmatpush1.bf16.msra.mxu0 0
        %1315 = vmatprep.subr.bf16.mxu0 0
        %1316 = vmatpush1.bf16.msra.mxu0 0
        %1317 = vmatprep.mubr.bf16.mxu0 0
        %1318 = vmatmul.mubr.bf16.gmra.mrb[0].mxu0 %v1280
        %v1319 = vpop.f32.mrb[0].mxu0
        %v1320 = vadd.f32 0.0, %v1319
        %v1321 = vpop.f32.mrb[0].mxu0
        %v1322 = vpop.f32.mrb[0].mxu0
        %v1323 = vadd.f32 0.0, %v1322
        %v1324 = vpop.f32.mrb[0].mxu0
        %1325 = vmatprep.mubr.bf16.mxu0 0
        %1326 = vmatmul.mubr.bf16.gmra.mrb[0].mxu0 %v1283
        %v1327 = vpop.f32.mrb[0].mxu0
        %v1328 = vadd.f32 0.0, %v1327
        %v1329 = vpop.f32.mrb[0].mxu0
        %v1330 = vpop.f32.mrb[0].mxu0
        %v1331 = vadd.f32 0.0, %v1330
        %v1332 = vpop.f32.mrb[0].mxu0
        %1333 = vdwg.mxu0
        %v1334 = vadd.f32 %v1186, %v1320
        %v1335 = vadd.f32 %v1187, %v1323
        %v1336 = vadd.f32 %v1188, %v1328
        %v1337 = vadd.f32 %v1189, %v1331
        %s1338 = scalar_lea.vmem %s1, 112
        %v1339 = vld [vmem:[%s1338] sm:$0xf]
        %v1340 = vld [vmem:[%s1338 + $0x4] sm:$0xf]
        %v1341 = vld [vmem:[%s1338 + $0x8] sm:$0xf]
        %v1342 = vld [vmem:[%s1338 + $0xc] sm:$0xf]
        %v1347 = vunpack.c.l.b16 %v1339
        %v1348 = vunpack.c.l.b16 %v1340
        %v1349 = vunpack.c.l.b16 %v1341
        %v1350 = vunpack.c.l.b16 %v1342
        %v1351 = vpack.c.b16 %v1348, %v1347
        %v1352 = vpack.c.b16 %v1350, %v1349
        %v1354 = vsel %vm325, %v1351, 0
        %v1357 = vsel %vm325, %v1352, 0
        %1359 = vmatprep.subr.bf16.mxu0 0
        %1360 = vmatpush1.bf16.msra.mxu0 %v309
        %1361 = vmatprep.subr.bf16.mxu0 0
        %1362 = vmatpush1.bf16.msra.mxu0 %v310
        %1363 = vmatprep.subr.bf16.mxu0 0
        %1364 = vmatpush1.bf16.msra.mxu0 0
        %1365 = vmatprep.subr.bf16.mxu0 0
        %1366 = vmatpush1.bf16.msra.mxu0 0
        %1367 = vmatprep.subr.bf16.mxu0 0
        %1368 = vmatpush1.bf16.msra.mxu0 0
        %1369 = vmatprep.subr.bf16.mxu0 0
        %1370 = vmatpush1.bf16.msra.mxu0 0
        %1371 = vmatprep.subr.bf16.mxu0 0
        %1372 = vmatpush1.bf16.msra.mxu0 0
        %1373 = vmatprep.subr.bf16.mxu0 0
        %1374 = vmatpush1.bf16.msra.mxu0 0
        %1375 = vmatprep.subr.bf16.mxu0 0
        %1376 = vmatpush1.bf16.msra.mxu0 0
        %1377 = vmatprep.subr.bf16.mxu0 0
        %1378 = vmatpush1.bf16.msra.mxu0 0
        %1379 = vmatprep.subr.bf16.mxu0 0
        %1380 = vmatpush1.bf16.msra.mxu0 0
        %1381 = vmatprep.subr.bf16.mxu0 0
        %1382 = vmatpush1.bf16.msra.mxu0 0
        %1383 = vmatprep.subr.bf16.mxu0 0
        %1384 = vmatpush1.bf16.msra.mxu0 0
        %1385 = vmatprep.subr.bf16.mxu0 0
        %1386 = vmatpush1.bf16.msra.mxu0 0
        %1387 = vmatprep.subr.bf16.mxu0 0
        %1388 = vmatpush1.bf16.msra.mxu0 0
        %1389 = vmatprep.subr.bf16.mxu0 0
        %1390 = vmatpush1.bf16.msra.mxu0 0
        %1391 = vmatprep.mubr.bf16.mxu0 0
        %1392 = vmatmul.mubr.bf16.gmra.mrb[0].mxu0 %v1354
        %v1393 = vpop.f32.mrb[0].mxu0
        %v1394 = vadd.f32 0.0, %v1393
        %v1395 = vpop.f32.mrb[0].mxu0
        %v1396 = vpop.f32.mrb[0].mxu0
        %v1397 = vadd.f32 0.0, %v1396
        %v1398 = vpop.f32.mrb[0].mxu0
        %1399 = vmatprep.mubr.bf16.mxu0 0
        %1400 = vmatmul.mubr.bf16.gmra.mrb[0].mxu0 %v1357
        %v1401 = vpop.f32.mrb[0].mxu0
        %v1402 = vadd.f32 0.0, %v1401
        %v1403 = vpop.f32.mrb[0].mxu0
        %v1404 = vpop.f32.mrb[0].mxu0
        %v1405 = vadd.f32 0.0, %v1404
        %v1406 = vpop.f32.mrb[0].mxu0
        %1407 = vdwg.mxu0
        %v1408 = vpack.c.bf16 %v1397, %v1394
        %v1409 = vpack.c.bf16 %v1405, %v1402
        %s1410 = scalar_lea.vmem %s224, 112 [#allocation4]
        %v1411 = vld [vmem:[%s1410] sm:$0xf]
        %v1412 = vld [vmem:[%s1410 + $0x4] sm:$0xf]
        %v1413 = vld [vmem:[%s1410 + $0x8] sm:$0xf]
        %v1414 = vld [vmem:[%s1410 + $0xc] sm:$0xf]
        %v1419 = vunpack.c.l.b16 %v1411
        %v1420 = vunpack.c.l.b16 %v1412
        %v1421 = vunpack.c.l.b16 %v1413
        %v1422 = vunpack.c.l.b16 %v1414
        %v1423 = vpack.c.b16 %v1420, %v1419
        %v1424 = vpack.c.b16 %v1422, %v1421
        %v1428 = vsel %vm325, %v1408, 0
        %v1431 = vsel %vm325, %v1409, 0
        %1433 = vmatprep.subr.bf16.mxu0 0
        %1434 = vmatpush1.bf16.msra.mxu0 %v1423
        %1435 = vmatprep.subr.bf16.mxu0 0
        %1436 = vmatpush1.bf16.msra.mxu0 %v1424
        %1437 = vmatprep.subr.bf16.mxu0 0
        %1438 = vmatpush1.bf16.msra.mxu0 0
        %1439 = vmatprep.subr.bf16.mxu0 0
        %1440 = vmatpush1.bf16.msra.mxu0 0
        %1441 = vmatprep.subr.bf16.mxu0 0
        %1442 = vmatpush1.bf16.msra.mxu0 0
        %1443 = vmatprep.subr.bf16.mxu0 0
        %1444 = vmatpush1.bf16.msra.mxu0 0
        %1445 = vmatprep.subr.bf16.mxu0 0
        %1446 = vmatpush1.bf16.msra.mxu0 0
        %1447 = vmatprep.subr.bf16.mxu0 0
        %1448 = vmatpush1.bf16.msra.mxu0 0
        %1449 = vmatprep.subr.bf16.mxu0 0
        %1450 = vmatpush1.bf16.msra.mxu0 0
        %1451 = vmatprep.subr.bf16.mxu0 0
        %1452 = vmatpush1.bf16.msra.mxu0 0
        %1453 = vmatprep.subr.bf16.mxu0 0
        %1454 = vmatpush1.bf16.msra.mxu0 0
        %1455 = vmatprep.subr.bf16.mxu0 0
        %1456 = vmatpush1.bf16.msra.mxu0 0
        %1457 = vmatprep.subr.bf16.mxu0 0
        %1458 = vmatpush1.bf16.msra.mxu0 0
        %1459 = vmatprep.subr.bf16.mxu0 0
        %1460 = vmatpush1.bf16.msra.mxu0 0
        %1461 = vmatprep.subr.bf16.mxu0 0
        %1462 = vmatpush1.bf16.msra.mxu0 0
        %1463 = vmatprep.subr.bf16.mxu0 0
        %1464 = vmatpush1.bf16.msra.mxu0 0
        %1465 = vmatprep.mubr.bf16.mxu0 0
        %1466 = vmatmul.mubr.bf16.gmra.mrb[0].mxu0 %v1428
        %v1467 = vpop.f32.mrb[0].mxu0
        %v1468 = vadd.f32 0.0, %v1467
        %v1469 = vpop.f32.mrb[0].mxu0
        %v1470 = vpop.f32.mrb[0].mxu0
        %v1471 = vadd.f32 0.0, %v1470
        %v1472 = vpop.f32.mrb[0].mxu0
        %1473 = vmatprep.mubr.bf16.mxu0 0
        %1474 = vmatmul.mubr.bf16.gmra.mrb[0].mxu0 %v1431
        %v1475 = vpop.f32.mrb[0].mxu0
        %v1476 = vadd.f32 0.0, %v1475
        %v1477 = vpop.f32.mrb[0].mxu0
        %v1478 = vpop.f32.mrb[0].mxu0
        %v1479 = vadd.f32 0.0, %v1478
        %v1480 = vpop.f32.mrb[0].mxu0
        %1481 = vdwg.mxu0
        %v1482 = vadd.f32 %v1334, %v1468
        %v1483 = vadd.f32 %v1335, %v1471
        %v1484 = vadd.f32 %v1336, %v1476
        %v1485 = vadd.f32 %v1337, %v1479
        %s1486 = scalar_lea.vmem %s1, 128
        %v1487 = vld [vmem:[%s1486] sm:$0xf]
        %v1488 = vld [vmem:[%s1486 + $0x4] sm:$0xf]
        %v1489 = vld [vmem:[%s1486 + $0x8] sm:$0xf]
        %v1490 = vld [vmem:[%s1486 + $0xc] sm:$0xf]
        %v1495 = vunpack.c.l.b16 %v1487
        %v1496 = vunpack.c.l.b16 %v1488
        %v1497 = vunpack.c.l.b16 %v1489
        %v1498 = vunpack.c.l.b16 %v1490
        %v1499 = vpack.c.b16 %v1496, %v1495
        %v1500 = vpack.c.b16 %v1498, %v1497
        %v1502 = vsel %vm325, %v1499, 0
        %v1505 = vsel %vm325, %v1500, 0
        %1507 = vmatprep.subr.bf16.mxu0 0
        %1508 = vmatpush1.bf16.msra.mxu0 %v309
        %1509 = vmatprep.subr.bf16.mxu0 0
        %1510 = vmatpush1.bf16.msra.mxu0 %v310
        %1511 = vmatprep.subr.bf16.mxu0 0
        %1512 = vmatpush1.bf16.msra.mxu0 0
        %1513 = vmatprep.subr.bf16.mxu0 0
        %1514 = vmatpush1.bf16.msra.mxu0 0
        %1515 = vmatprep.subr.bf16.mxu0 0
        %1516 = vmatpush1.bf16.msra.mxu0 0
        %1517 = vmatprep.subr.bf16.mxu0 0
        %1518 = vmatpush1.bf16.msra.mxu0 0
        %1519 = vmatprep.subr.bf16.mxu0 0
        %1520 = vmatpush1.bf16.msra.mxu0 0
        %1521 = vmatprep.subr.bf16.mxu0 0
        %1522 = vmatpush1.bf16.msra.mxu0 0
        %1523 = vmatprep.subr.bf16.mxu0 0
        %1524 = vmatpush1.bf16.msra.mxu0 0
        %1525 = vmatprep.subr.bf16.mxu0 0
        %1526 = vmatpush1.bf16.msra.mxu0 0
        %1527 = vmatprep.subr.bf16.mxu0 0
        %1528 = vmatpush1.bf16.msra.mxu0 0
        %1529 = vmatprep.subr.bf16.mxu0 0
        %1530 = vmatpush1.bf16.msra.mxu0 0
        %1531 = vmatprep.subr.bf16.mxu0 0
        %1532 = vmatpush1.bf16.msra.mxu0 0
        %1533 = vmatprep.subr.bf16.mxu0 0
        %1534 = vmatpush1.bf16.msra.mxu0 0
        %1535 = vmatprep.subr.bf16.mxu0 0
        %1536 = vmatpush1.bf16.msra.mxu0 0
        %1537 = vmatprep.subr.bf16.mxu0 0
        %1538 = vmatpush1.bf16.msra.mxu0 0
        %1539 = vmatprep.mubr.bf16.mxu0 0
        %1540 = vmatmul.mubr.bf16.gmra.mrb[0].mxu0 %v1502
        %v1541 = vpop.f32.mrb[0].mxu0
        %v1542 = vadd.f32 0.0, %v1541
        %v1543 = vpop.f32.mrb[0].mxu0
        %v1544 = vpop.f32.mrb[0].mxu0
        %v1545 = vadd.f32 0.0, %v1544
        %v1546 = vpop.f32.mrb[0].mxu0
        %1547 = vmatprep.mubr.bf16.mxu0 0
        %1548 = vmatmul.mubr.bf16.gmra.mrb[0].mxu0 %v1505
        %v1549 = vpop.f32.mrb[0].mxu0
        %v1550 = vadd.f32 0.0, %v1549
        %v1551 = vpop.f32.mrb[0].mxu0
        %v1552 = vpop.f32.mrb[0].mxu0
        %v1553 = vadd.f32 0.0, %v1552
        %v1554 = vpop.f32.mrb[0].mxu0
        %1555 = vdwg.mxu0
        %v1556 = vpack.c.bf16 %v1545, %v1542
        %v1557 = vpack.c.bf16 %v1553, %v1550
        %s1558 = scalar_lea.vmem %s224, 128 [#allocation4]
        %v1559 = vld [vmem:[%s1558] sm:$0xf]
        %v1560 = vld [vmem:[%s1558 + $0x4] sm:$0xf]
        %v1561 = vld [vmem:[%s1558 + $0x8] sm:$0xf]
        %v1562 = vld [vmem:[%s1558 + $0xc] sm:$0xf]
        %v1567 = vunpack.c.l.b16 %v1559
        %v1568 = vunpack.c.l.b16 %v1560
        %v1569 = vunpack.c.l.b16 %v1561
        %v1570 = vunpack.c.l.b16 %v1562
        %v1571 = vpack.c.b16 %v1568, %v1567
        %v1572 = vpack.c.b16 %v1570, %v1569
        %v1576 = vsel %vm325, %v1556, 0
        %v1579 = vsel %vm325, %v1557, 0
        %1581 = vmatprep.subr.bf16.mxu0 0
        %1582 = vmatpush1.bf16.msra.mxu0 %v1571
        %1583 = vmatprep.subr.bf16.mxu0 0
        %1584 = vmatpush1.bf16.msra.mxu0 %v1572
        %1585 = vmatprep.subr.bf16.mxu0 0
        %1586 = vmatpush1.bf16.msra.mxu0 0
        %1587 = vmatprep.subr.bf16.mxu0 0
        %1588 = vmatpush1.bf16.msra.mxu0 0
        %1589 = vmatprep.subr.bf16.mxu0 0
        %1590 = vmatpush1.bf16.msra.mxu0 0
        %1591 = vmatprep.subr.bf16.mxu0 0
        %1592 = vmatpush1.bf16.msra.mxu0 0
        %1593 = vmatprep.subr.bf16.mxu0 0
        %1594 = vmatpush1.bf16.msra.mxu0 0
        %1595 = vmatprep.subr.bf16.mxu0 0
        %1596 = vmatpush1.bf16.msra.mxu0 0
        %1597 = vmatprep.subr.bf16.mxu0 0
        %1598 = vmatpush1.bf16.msra.mxu0 0
        %1599 = vmatprep.subr.bf16.mxu0 0
        %1600 = vmatpush1.bf16.msra.mxu0 0
        %1601 = vmatprep.subr.bf16.mxu0 0
        %1602 = vmatpush1.bf16.msra.mxu0 0
        %1603 = vmatprep.subr.bf16.mxu0 0
        %1604 = vmatpush1.bf16.msra.mxu0 0
        %1605 = vmatprep.subr.bf16.mxu0 0
        %1606 = vmatpush1.bf16.msra.mxu0 0
        %1607 = vmatprep.subr.bf16.mxu0 0
        %1608 = vmatpush1.bf16.msra.mxu0 0
        %1609 = vmatprep.subr.bf16.mxu0 0
        %1610 = vmatpush1.bf16.msra.mxu0 0
        %1611 = vmatprep.subr.bf16.mxu0 0
        %1612 = vmatpush1.bf16.msra.mxu0 0
        %1613 = vmatprep.mubr.bf16.mxu0 0
        %1614 = vmatmul.mubr.bf16.gmra.mrb[0].mxu0 %v1576
        %v1615 = vpop.f32.mrb[0].mxu0
        %v1616 = vadd.f32 0.0, %v1615
        %v1617 = vpop.f32.mrb[0].mxu0
        %v1618 = vpop.f32.mrb[0].mxu0
        %v1619 = vadd.f32 0.0, %v1618
        %v1620 = vpop.f32.mrb[0].mxu0
        %1621 = vmatprep.mubr.bf16.mxu0 0
        %1622 = vmatmul.mubr.bf16.gmra.mrb[0].mxu0 %v1579
        %v1623 = vpop.f32.mrb[0].mxu0
        %v1624 = vadd.f32 0.0, %v1623
        %v1625 = vpop.f32.mrb[0].mxu0
        %v1626 = vpop.f32.mrb[0].mxu0
        %v1627 = vadd.f32 0.0, %v1626
        %v1628 = vpop.f32.mrb[0].mxu0
        %1629 = vdwg.mxu0
        %v1630 = vadd.f32 %v1482, %v1616
        %v1631 = vadd.f32 %v1483, %v1619
        %v1632 = vadd.f32 %v1484, %v1624
        %v1633 = vadd.f32 %v1485, %v1627
        %v1634 = vld [vmem:[%s254] sm:$0x1]
        %v1636 = vlaneseq
        %v1637 = vshrl.u32 %v1636, 7
        %v1638 = vsub.s32 0, %v1637
        %v1639 = vrot.slane %v1634, %v1638
        %v1641 = vmul.f32 %v1630, %v1639
        %v1642 = vmul.f32 %v1631, %v1639
        %v1643 = vmul.f32 %v1632, %v1639
        %v1644 = vmul.f32 %v1633, %v1639
        %v1645 = vld [vmem:[%s257] sm:$0x1]
        %v1647 = vlaneseq
        %v1648 = vshrl.u32 %v1647, 7
        %v1649 = vsub.s32 0, %v1648
        %v1650 = vrot.slane %v1645, %v1649
        %v1652 = vadd.f32 %v1641, %v1650
        %v1653 = vadd.f32 %v1642, %v1650
        %v1654 = vadd.f32 %v1643, %v1650
        %v1655 = vadd.f32 %v1644, %v1650
        %p1656 = scmp.ge.s32.totalorder %s19, 2
        %p1657 = scmp.eq.s32.totalorder %s291, 0
        %p1658 = pnand %p1656, %p1657
        %p1659 = pneg %p1658
        %s1660 = scalar_select %p1659, 1, 0
        %s1661 = scvt.s32.f32 %s1660
        %v1662 = vld [vmem:[#allocation3] sm:$0xff]
        %v1663 = vld [vmem:[#allocation3 + $0x8] sm:$0xff]
        %v1664 = vld [vmem:[#allocation3 + $0x10] sm:$0xff]
        %v1665 = vld [vmem:[#allocation3 + $0x18] sm:$0xff]
        %v1666 = vstv %s1661
        %v1667 = vmul.f32 %v1666, %v1662
        %v1668 = vmul.f32 %v1666, %v1663
        %v1669 = vmul.f32 %v1666, %v1664
        %v1670 = vmul.f32 %v1666, %v1665
        %v1671 = vadd.f32 %v1652, %v1667
        %v1672 = vadd.f32 %v1653, %v1668
        %v1673 = vadd.f32 %v1654, %v1669
        %v1674 = vadd.f32 %v1655, %v1670
        %v1675 = vmax.f32 %v1671, 0.0
        %v1676 = vmax.f32 %v1672, 0.0
        %v1677 = vmax.f32 %v1673, 0.0
        %v1678 = vmax.f32 %v1674, 0.0
        %1679 = vst.msk [vmem:[#allocation2] sm:$0xff] %vm325, %v1675
        %1680 = vst.msk [vmem:[#allocation2 + $0x8] sm:$0xff] %vm325, %v1676
        %1681 = vst.msk [vmem:[#allocation2 + $0x10] sm:$0xff] %vm325, %v1677
        %1682 = vst.msk [vmem:[#allocation2 + $0x18] sm:$0xff] %vm325, %v1678
        %p1683 = scmp.eq.s32.totalorder %s19, 4
        // Predicated region
        $region53: #{network_forward.2} parent=39 // pred_check
          %p1684 = pneg %p1683
        $region54: #{network_forward.2} parent=39 // pred_check_branch
          %1686 = sbr.rel (%p1684) target = $region56
        $region55: #{network_forward.2} parent=39 // pred_region
          %v1687 = vld [vmem:[#allocation2] sm:$0xff]
          %v1688 = vld [vmem:[#allocation2 + $0x8] sm:$0xff]
          %v1689 = vld [vmem:[#allocation2 + $0x10] sm:$0xff]
          %v1690 = vld [vmem:[#allocation2 + $0x18] sm:$0xff]
          %1691 = vst.msk [vmem:[%s5] sm:$0xff] %vm325, %v1687
          %1692 = vst.msk [vmem:[%s5 + $0x8] sm:$0xff] %vm325, %v1688
          %1693 = vst.msk [vmem:[%s5 + $0x10] sm:$0xff] %vm325, %v1689
          %1694 = vst.msk [vmem:[%s5 + $0x18] sm:$0xff] %vm325, %v1690
        $region56: #{network_forward.2} parent=39 // pred_fallthru
          _
        // Predicated region
        $region57: #{network_forward.2} parent=39 // pred_check
          %p1695 = pneg %p152
        $region58: #{network_forward.2} parent=39 // pred_check_branch
          %1697 = sbr.rel (%p1695) target = $region60
        $region59: #{network_forward.2} parent=39 // pred_region
          _
        $region60: #{network_forward.2} parent=39 // pred_fallthru
          _
        // Predicated region
        $region61: #{network_forward.2} parent=39 // pred_check
          %p1698 = pneg %p152
        $region62: #{network_forward.2} parent=39 // pred_check_branch
          %1700 = sbr.rel (%p1698) target = $region64
        $region63: #{network_forward.2} parent=39 // pred_region
          _
        $region64: #{network_forward.2} parent=39 // pred_fallthru
          _
      $region40: #{network_forward.2} parent=5 // pred_fallthru
        _
      %p1701 = scmp.le.s32.totalorder 2, %s14
      // Predicated region
      $region65: #{network_forward.2} parent=5 // pred_check
        %p1702 = pneg %p1701
      $region66: #{network_forward.2} parent=5 // pred_check_branch
        %1704 = sbr.rel (%p1702) target = $region68
      $region67: #{network_forward.2} parent=5 // pred_region
        %s1705 = ssub.s32 %s14, 2
      $region68: #{network_forward.2} parent=5 // pred_fallthru
        _
    $region6: #{network_forward.2} parent=1 // loop_footer
      %s18 = sadd.s32 1, %s14
    $region7: #{network_forward.2} parent=1 // loop_footer_branch
      %13 = sbr.rel target = $region3
    $region8: #{network_forward.2} parent=1 // loop_exit
      _
    %1706 = vsyncpa [#allocation5], 1
    %s1707 = scalar_lea.sflag [#allocation5], 1
    %1708 = vsyncpa %s1707, 1

</llo_original>
